<compile_context>
chip_gen: v7x
topology: tpu7x:2x2x1
jax: 0.10.0
libtpu: 0.0.40
codegen_flags: <defaults>
</compile_context>

<pallas_src>
from functools import partial

import jax
import jax.numpy as jnp
from jax import lax
from jax.experimental import pallas as pl
from jax.experimental.pallas import tpu as pltpu


def _round_up(v, m):
    return ((v + m - 1) // m) * m


def attention_kernel(x_ref, wqkv_ref, wproj_ref, bias_ref, o_ref,
                     acc_ref, obuf_ref, *, heads_per_group, head_dim, gdp):
    g = pl.program_id(1)

    @pl.when(g == 0)
    def _():
        acc_ref[...] = jnp.zeros_like(acc_ref)

    x = x_ref[0]          # (N, Cp)        bf16
    wqkv = wqkv_ref[0]    # (Cp, 3*GDp)    bf16  (scale folded into the Q section)
    wproj = wproj_ref[0]  # (GDp, Cp)      bf16  (padded rows are zero)

    # Fused Q/K/V projection for this head group: one wide MXU matmul,
    # f32 accumulation.  Section boundaries are 128-aligned (GDp % 128 == 0).
    qkv = jnp.dot(x, wqkv, preferred_element_type=jnp.float32)   # (N, 3*GDp) f32
    q = qkv[:, 0 * gdp:1 * gdp]
    k = qkv[:, 1 * gdp:2 * gdp]
    v = qkv[:, 2 * gdp:3 * gdp]

    # Zero the group output buffer (its padded tail columns feed the proj
    # matmul against zero weight rows; keep them at 0.0, never garbage).
    obuf_ref[...] = jnp.zeros_like(obuf_ref)

    # Per-head score / softmax / P·V (statically unrolled; G is small).
    # Softmax normalization is DEFERRED: p = exp(s - m) is used unnormalized
    # in the (N,N)@(N,D) matmul, then the (N,D) result is scaled by 1/rowsum
    # -> an N*D VALU multiply instead of an N*N one.  Reciprocal uses the EUP.
    for h in range(heads_per_group):
        lo = h * head_dim
        hi = lo + head_dim
        qh = q[:, lo:hi].astype(jnp.bfloat16)                    # (N, D)
        kh = k[:, lo:hi].astype(jnp.bfloat16)                    # (N, D)
        vh = v[:, lo:hi].astype(jnp.bfloat16)                    # (N, D)

        # Scores: contract the head dims directly (no kh.T / XLU transpose).
        s = lax.dot_general(qh, kh, (((1,), (1,)), ((), ())),
                            preferred_element_type=jnp.float32)  # (N, N) f32
        m = jnp.max(s, axis=-1, keepdims=True)
        p = jnp.exp(s - m)                                       # unnormalized
        l = jnp.sum(p, axis=-1, keepdims=True)                   # (N, 1)

        oh = jnp.dot(p.astype(jnp.bfloat16), vh,
                     preferred_element_type=jnp.float32)         # (N, D) f32
        oh = oh * pl.reciprocal(l, approx=True)                  # deferred norm
        obuf_ref[:, lo:hi] = oh

    # This group's slice of the output projection, accumulated across groups.
    acc_ref[...] += jnp.dot(obuf_ref[...].astype(jnp.bfloat16), wproj,
                            preferred_element_type=jnp.float32)  # (N, Cp)

    @pl.when(g == pl.num_programs(1) - 1)
    def _():
        o_ref[0] = (acc_ref[...] + bias_ref[...]).astype(o_ref.dtype)


def pack_attention_params(w_qkv, w_proj, b_proj, *, num_heads, group_width=128):
    """One-time, per-parameter repack (hoisted out of the per-call path).

    Returns head-group-major, lane-padded bf16 weight tiles with the qk scale
    folded into the Q weights.
    """
    C = w_proj.shape[0]
    H = num_heads
    D = C // H
    scale = D ** (-0.5)

    # Heads per group: fill ~group_width MXU lanes, divide H evenly.
    G = max(1, min(H, group_width // max(D, 1)))
    while H % G != 0:
        G -= 1
    n_groups = H // G
    GD = G * D
    GDp = _round_up(GD, 128)
    Cp = _round_up(C, 128)

    # w_qkv columns are ordered (3, H, D), matching reshape(B, N, 3, H, D).
    w3 = w_qkv.reshape(C, 3, H, D)
    wq = w3[:, 0] * scale            # fold qk scale into the Q weights
    wk = w3[:, 1]
    wv = w3[:, 2]

    def to_groups(w):                # (C, H, D) -> (n_groups, Cp, GDp), zero-padded
        w = w.reshape(C, n_groups, G, D)
        w = jnp.transpose(w, (1, 0, 2, 3)).reshape(n_groups, C, GD)
        return jnp.pad(w, ((0, 0), (0, Cp - C), (0, GDp - GD)))

    wqkv_packed = jnp.concatenate(
        [to_groups(wq), to_groups(wk), to_groups(wv)], axis=-1
    ).astype(jnp.bfloat16)                                        # (n_groups, Cp, 3*GDp)

    wp = w_proj.reshape(n_groups, GD, C)                          # head-major rows
    wproj_packed = jnp.pad(
        wp, ((0, 0), (0, GDp - GD), (0, Cp - C))).astype(jnp.bfloat16)  # (n_groups, GDp, Cp)

    bias_packed = jnp.pad(b_proj.astype(jnp.float32),
                          ((0, 0), (0, Cp - C)))                  # (1, Cp)

    return dict(wqkv=wqkv_packed, wproj=wproj_packed, bias=bias_packed,
                num_heads=H, head_dim=D, heads_per_group=G,
                n_groups=n_groups, gdp=GDp, c=C, cp=Cp)


def attention_pallas(x, params):
    B, N, C = x.shape
    Cp = params["cp"]
    GDp = params["gdp"]
    n_groups = params["n_groups"]
    G = params["heads_per_group"]
    D = params["head_dim"]
    H = params["num_heads"]

    # Per-call input prep: bf16 cast + lane-pad the channel dim.
    xb = jnp.pad(x.astype(jnp.bfloat16), ((0, 0), (0, 0), (0, Cp - C)))

    flops = int(B * (6 * N * Cp * GDp * n_groups        # fused QKV projections
                     + 4 * N * N * H * D                # scores + P·V
                     + 2 * N * GDp * Cp * n_groups))    # output projection
    cost = pl.CostEstimate(
        flops=flops,
        transcendentals=int(B * H * N * N),
        bytes_accessed=int(B * N * Cp * 2                       # x (bf16)
                           + B * N * Cp * x.dtype.itemsize      # out
                           + B * n_groups * (Cp * 3 * GDp + GDp * Cp) * 2  # weights, refetched per b
                           + Cp * 4),                           # bias
    )

    kernel = partial(attention_kernel, heads_per_group=G, head_dim=D, gdp=GDp)

    out_p = pl.pallas_call(
        kernel,
        out_shape=jax.ShapeDtypeStruct((B, N, Cp), x.dtype),
        grid=(B, n_groups),   # head-group axis is innermost & "arbitrary" (proj accumulation)
        in_specs=[
            pl.BlockSpec((1, N, Cp),       lambda bi, gi: (bi, 0, 0)),  # x (resident across g)
            pl.BlockSpec((1, Cp, 3 * GDp), lambda bi, gi: (gi, 0, 0)),  # fused QKV weights[g]
            pl.BlockSpec((1, GDp, Cp),     lambda bi, gi: (gi, 0, 0)),  # proj weights[g]
            pl.BlockSpec((1, Cp),          lambda bi, gi: (0, 0)),      # proj bias
        ],
        out_specs=pl.BlockSpec((1, N, Cp), lambda bi, gi: (bi, 0, 0)),
        scratch_shapes=[
            pltpu.VMEM((N, Cp), jnp.float32),    # output-projection accumulator
            pltpu.VMEM((N, GDp), jnp.float32),   # per-group attention output buffer
        ],
        compiler_params=pltpu.CompilerParams(
            dimension_semantics=("parallel", "arbitrary")),
        cost_estimate=cost,
    )(xb, params["wqkv"], params["wproj"], params["bias"])

    return out_p[:, :, :C]


def attention_reference(x, w_qkv, w_proj, b_proj, *, num_heads):
    # Pure-JAX f32 reference mirroring the PyTorch forward.
    B, N, C = x.shape
    D = C // num_heads
    scale = D ** (-0.5)
    qkv = x @ w_qkv                                            # (B, N, 3C)
    qkv = qkv.reshape(B, N, 3, num_heads, D).transpose(2, 0, 3, 1, 4)
    q, k, v = qkv[0], qkv[1], qkv[2]                           # (B, H, N, D)
    attn = jnp.einsum('bhnd,bhmd->bhnm', q, k) * scale
    attn = jax.nn.softmax(attn, axis=-1)
    out = jnp.einsum('bhnm,bhmd->bhnd', attn, v)               # (B, H, N, D)
    out = out.transpose(0, 2, 1, 3).reshape(B, N, C)
    return out @ w_proj + b_proj[0]


if __name__ == "__main__":
    B, N, C = 2, 8, 32
    NUM_HEADS = 8   # head_dim = 4

    key = jax.random.PRNGKey(0)
    kx, kqkv, kproj, kb = jax.random.split(key, 4)

    x = jax.random.normal(kx, (B, N, C), dtype=jnp.float32)
    # PyTorch Linear shapes, stored transposed: (in, out).
    w_qkv = jax.random.normal(kqkv, (C, 3 * C), dtype=jnp.float32) * (1.0 / C ** 0.5)
    w_proj = jax.random.normal(kproj, (C, C), dtype=jnp.float32) * (1.0 / C ** 0.5)
    b_proj = jax.random.normal(kb, (1, C), dtype=jnp.float32) * 0.01

    # One-time parameter repack (would be cached alongside the params in a model).
    params = pack_attention_params(w_qkv, w_proj, b_proj, num_heads=NUM_HEADS)

    out = attention_pallas(x, params)
    out = jax.block_until_ready(out)

    ref = attention_reference(x, w_qkv, w_proj, b_proj, num_heads=NUM_HEADS)
    assert out.shape == (B, N, C)
    # Relaxed tolerance: kernel runs matmuls with bf16 inputs (f32 accumulation,
    # f32 softmax) and an EUP-approximate softmax reciprocal; reference is f32.
    max_err = float(jnp.max(jnp.abs(out - ref)))
    assert jnp.allclose(out, ref, atol=1e-1, rtol=1e-1), \
        f"mismatch vs reference, max abs err={max_err}"

    print("KERNEL_OK")
</pallas_src>

<mosaic_0001>
module attributes {stable_mosaic.version = 11 : i64} {
  func.func @attention_kernel(%arg0: i32, %arg1: i32, %arg2: memref<1x8x128xbf16, #tpu.memory_space<vmem>>, %arg3: memref<1x128x384xbf16, #tpu.memory_space<vmem>>, %arg4: memref<1x128x128xbf16, #tpu.memory_space<vmem>>, %arg5: memref<1x128xf32, #tpu.memory_space<vmem>>, %arg6: memref<1x8x128xf32, #tpu.memory_space<vmem>>, %arg7: memref<8x128xf32, #tpu.memory_space<vmem>>, %arg8: memref<8x128xf32, #tpu.memory_space<vmem>>) attributes {dimension_semantics = [#tpu.dimension_semantics<parallel>, #tpu.dimension_semantics<arbitrary>], iteration_bounds = array<i64: 2, 1>, scalar_prefetch = 0 : i64, scratch_operands = 2 : i64, tpu.core_type = #tpu.core_type<tc>, window_params = [{transform_indices = @transform_0, window_bounds = array<i64: 1, 8, 128>}, {transform_indices = @transform_1, window_bounds = array<i64: 1, 128, 384>}, {transform_indices = @transform_2, window_bounds = array<i64: 1, 128, 128>}, {pipeline_mode = #tpu.pipeline_mode<synchronous>, transform_indices = @transform_3, window_bounds = array<i64: 1, 128>}, {transform_indices = @transform_4, window_bounds = array<i64: 1, 8, 128>}]} {
    %c0_i32 = arith.constant 0 : i32
    %0 = arith.cmpi eq, %arg1, %c0_i32 : i32
    %1 = arith.extui %0 : i1 to i32
    %c0_i32_0 = arith.constant 0 : i32
    %2 = arith.cmpi ne, %1, %c0_i32_0 : i32
    scf.if %2 {
      %cst_62 = arith.constant 0.000000e+00 : f32
      %184 = vector.broadcast %cst_62 : f32 to vector<8x128xf32>
      %c0_63 = arith.constant 0 : index
      %c0_64 = arith.constant 0 : index
      %185 = vector.load %arg7[%c0_63, %c0_64] : memref<8x128xf32, #tpu.memory_space<vmem>>, vector<8x128xf32>
      tpu.vector_store %arg7[%c0_63, %c0_64], %184 {strides = array<i32>} : memref<8x128xf32, #tpu.memory_space<vmem>>, vector<8x128xf32>,
    } else {
    }
    %c0 = arith.constant 0 : index
    %c0_1 = arith.constant 0 : index
    %c0_2 = arith.constant 0 : index
    %3 = vector.load %arg2[%c0, %c0_1, %c0_2] : memref<1x8x128xbf16, #tpu.memory_space<vmem>>, vector<1x8x128xbf16>
    %4 = vector.shape_cast %3 : vector<1x8x128xbf16> to vector<8x128xbf16>
    %c0_3 = arith.constant 0 : index
    %c0_4 = arith.constant 0 : index
    %c0_5 = arith.constant 0 : index
    %5 = vector.load %arg3[%c0_3, %c0_4, %c0_5] : memref<1x128x384xbf16, #tpu.memory_space<vmem>>, vector<1x128x384xbf16>
    %6 = vector.shape_cast %5 : vector<1x128x384xbf16> to vector<128x384xbf16>
    %c0_6 = arith.constant 0 : index
    %c0_7 = arith.constant 0 : index
    %c0_8 = arith.constant 0 : index
    %7 = vector.load %arg4[%c0_6, %c0_7, %c0_8] : memref<1x128x128xbf16, #tpu.memory_space<vmem>>, vector<1x128x128xbf16>
    %8 = vector.shape_cast %7 : vector<1x128x128xbf16> to vector<128x128xbf16>
    %cst = arith.constant dense<0.000000e+00> : vector<8x384xf32>
    %9 = tpu.matmul %4, %6, %cst {dimension_numbers = #tpu.dot_dimension_numbers<[1], [0], [0], [1], [0, 0, 1, 1], [], []>} : vector<8x128xbf16>, vector<128x384xbf16>, vector<8x384xf32> -> vector<8x384xf32>
    %10 = vector.extract_strided_slice %9 {offsets = [0, 0], sizes = [8, 128], strides = [1, 1]} : vector<8x384xf32> to vector<8x128xf32>
    %11 = vector.extract_strided_slice %9 {offsets = [0, 128], sizes = [8, 128], strides = [1, 1]} : vector<8x384xf32> to vector<8x128xf32>
    %12 = vector.extract_strided_slice %9 {offsets = [0, 256], sizes = [8, 128], strides = [1, 1]} : vector<8x384xf32> to vector<8x128xf32>
    %cst_9 = arith.constant 0.000000e+00 : f32
    %13 = vector.broadcast %cst_9 : f32 to vector<8x128xf32>
    %c0_10 = arith.constant 0 : index
    %c0_11 = arith.constant 0 : index
    %14 = vector.load %arg8[%c0_10, %c0_11] : memref<8x128xf32, #tpu.memory_space<vmem>>, vector<8x128xf32>
    tpu.vector_store %arg8[%c0_10, %c0_11], %13 {strides = array<i32>} : memref<8x128xf32, #tpu.memory_space<vmem>>, vector<8x128xf32>,
    %15 = vector.extract_strided_slice %10 {offsets = [0, 0], sizes = [8, 4], strides = [1, 1]} : vector<8x128xf32> to vector<8x4xf32>
    %16 = arith.truncf %15 : vector<8x4xf32> to vector<8x4xbf16>
    %17 = vector.extract_strided_slice %11 {offsets = [0, 0], sizes = [8, 4], strides = [1, 1]} : vector<8x128xf32> to vector<8x4xf32>
    %18 = arith.truncf %17 : vector<8x4xf32> to vector<8x4xbf16>
    %19 = vector.extract_strided_slice %12 {offsets = [0, 0], sizes = [8, 4], strides = [1, 1]} : vector<8x128xf32> to vector<8x4xf32>
    %20 = arith.truncf %19 : vector<8x4xf32> to vector<8x4xbf16>
    %cst_12 = arith.constant dense<0.000000e+00> : vector<8x8xf32>
    %21 = tpu.matmul %16, %18, %cst_12 {dimension_numbers = #tpu.dot_dimension_numbers<[1], [1], [0], [0], [0, 0, 1, 0], [], []>} : vector<8x4xbf16>, vector<8x4xbf16>, vector<8x8xf32> -> vector<8x8xf32>
    %cst_13 = arith.constant dense<0xFF800000> : vector<8xf32>
    %22 = vector.multi_reduction <maximumf>, %21, %cst_13 [1] : vector<8x8xf32> to vector<8xf32>
    %23 = vector.shape_cast %22 : vector<8xf32> to vector<8x1xf32>
    %24 = vector.broadcast %23 : vector<8x1xf32> to vector<8x8xf32>
    %25 = arith.subf %21, %24 : vector<8x8xf32>
    %26 = math.exp %25 : vector<8x8xf32>
    %cst_14 = arith.constant dense<0.000000e+00> : vector<8xf32>
    %27 = vector.multi_reduction <add>, %26, %cst_14 [1] : vector<8x8xf32> to vector<8xf32>
    %28 = vector.shape_cast %27 : vector<8xf32> to vector<8x1xf32>
    %29 = arith.truncf %26 : vector<8x8xf32> to vector<8x8xbf16>
    %cst_15 = arith.constant dense<0.000000e+00> : vector<8x4xf32>
    %30 = tpu.matmul %29, %20, %cst_15 {dimension_numbers = #tpu.dot_dimension_numbers<[1], [0], [0], [1], [0, 0, 1, 1], [], []>} : vector<8x8xbf16>, vector<8x4xbf16>, vector<8x4xf32> -> vector<8x4xf32>
    %31 = tpu.reciprocal %28 {approx = true} : vector<8x1xf32> -> vector<8x1xf32>
    %32 = vector.broadcast %31 : vector<8x1xf32> to vector<8x4xf32>
    %33 = arith.mulf %30, %32 : vector<8x4xf32>
    %c0_16 = arith.constant 0 : index
    %c0_17 = arith.constant 0 : index
    %34 = vector.load %arg8[%c0_16, %c0_17] : memref<8x128xf32, #tpu.memory_space<vmem>>, vector<8x4xf32>
    tpu.vector_store %arg8[%c0_16, %c0_17], %33 {strides = array<i32>} : memref<8x128xf32, #tpu.memory_space<vmem>>, vector<8x4xf32>,
    %35 = vector.extract_strided_slice %10 {offsets = [0, 4], sizes = [8, 4], strides = [1, 1]} : vector<8x128xf32> to vector<8x4xf32>
    %36 = arith.truncf %35 : vector<8x4xf32> to vector<8x4xbf16>
    %37 = vector.extract_strided_slice %11 {offsets = [0, 4], sizes = [8, 4], strides = [1, 1]} : vector<8x128xf32> to vector<8x4xf32>
    %38 = arith.truncf %37 : vector<8x4xf32> to vector<8x4xbf16>
    %39 = vector.extract_strided_slice %12 {offsets = [0, 4], sizes = [8, 4], strides = [1, 1]} : vector<8x128xf32> to vector<8x4xf32>
    %40 = arith.truncf %39 : vector<8x4xf32> to vector<8x4xbf16>
    %cst_18 = arith.constant dense<0.000000e+00> : vector<8x8xf32>
    %41 = tpu.matmul %36, %38, %cst_18 {dimension_numbers = #tpu.dot_dimension_numbers<[1], [1], [0], [0], [0, 0, 1, 0], [], []>} : vector<8x4xbf16>, vector<8x4xbf16>, vector<8x8xf32> -> vector<8x8xf32>
    %cst_19 = arith.constant dense<0xFF800000> : vector<8xf32>
    %42 = vector.multi_reduction <maximumf>, %41, %cst_19 [1] : vector<8x8xf32> to vector<8xf32>
    %43 = vector.shape_cast %42 : vector<8xf32> to vector<8x1xf32>
    %44 = vector.broadcast %43 : vector<8x1xf32> to vector<8x8xf32>
    %45 = arith.subf %41, %44 : vector<8x8xf32>
    %46 = math.exp %45 : vector<8x8xf32>
    %cst_20 = arith.constant dense<0.000000e+00> : vector<8xf32>
    %47 = vector.multi_reduction <add>, %46, %cst_20 [1] : vector<8x8xf32> to vector<8xf32>
    %48 = vector.shape_cast %47 : vector<8xf32> to vector<8x1xf32>
    %49 = arith.truncf %46 : vector<8x8xf32> to vector<8x8xbf16>
    %cst_21 = arith.constant dense<0.000000e+00> : vector<8x4xf32>
    %50 = tpu.matmul %49, %40, %cst_21 {dimension_numbers = #tpu.dot_dimension_numbers<[1], [0], [0], [1], [0, 0, 1, 1], [], []>} : vector<8x8xbf16>, vector<8x4xbf16>, vector<8x4xf32> -> vector<8x4xf32>
    %51 = tpu.reciprocal %48 {approx = true} : vector<8x1xf32> -> vector<8x1xf32>
    %52 = vector.broadcast %51 : vector<8x1xf32> to vector<8x4xf32>
    %53 = arith.mulf %50, %52 : vector<8x4xf32>
    %c0_22 = arith.constant 0 : index
    %c4 = arith.constant 4 : index
    %54 = vector.load %arg8[%c0_22, %c4] : memref<8x128xf32, #tpu.memory_space<vmem>>, vector<8x4xf32>
    tpu.vector_store %arg8[%c0_22, %c4], %53 {strides = array<i32>} : memref<8x128xf32, #tpu.memory_space<vmem>>, vector<8x4xf32>,
    %55 = vector.extract_strided_slice %10 {offsets = [0, 8], sizes = [8, 4], strides = [1, 1]} : vector<8x128xf32> to vector<8x4xf32>
    %56 = arith.truncf %55 : vector<8x4xf32> to vector<8x4xbf16>
    %57 = vector.extract_strided_slice %11 {offsets = [0, 8], sizes = [8, 4], strides = [1, 1]} : vector<8x128xf32> to vector<8x4xf32>
    %58 = arith.truncf %57 : vector<8x4xf32> to vector<8x4xbf16>
    %59 = vector.extract_strided_slice %12 {offsets = [0, 8], sizes = [8, 4], strides = [1, 1]} : vector<8x128xf32> to vector<8x4xf32>
    %60 = arith.truncf %59 : vector<8x4xf32> to vector<8x4xbf16>
    %cst_23 = arith.constant dense<0.000000e+00> : vector<8x8xf32>
    %61 = tpu.matmul %56, %58, %cst_23 {dimension_numbers = #tpu.dot_dimension_numbers<[1], [1], [0], [0], [0, 0, 1, 0], [], []>} : vector<8x4xbf16>, vector<8x4xbf16>, vector<8x8xf32> -> vector<8x8xf32>
    %cst_24 = arith.constant dense<0xFF800000> : vector<8xf32>
    %62 = vector.multi_reduction <maximumf>, %61, %cst_24 [1] : vector<8x8xf32> to vector<8xf32>
    %63 = vector.shape_cast %62 : vector<8xf32> to vector<8x1xf32>
    %64 = vector.broadcast %63 : vector<8x1xf32> to vector<8x8xf32>
    %65 = arith.subf %61, %64 : vector<8x8xf32>
    %66 = math.exp %65 : vector<8x8xf32>
    %cst_25 = arith.constant dense<0.000000e+00> : vector<8xf32>
    %67 = vector.multi_reduction <add>, %66, %cst_25 [1] : vector<8x8xf32> to vector<8xf32>
    %68 = vector.shape_cast %67 : vector<8xf32> to vector<8x1xf32>
    %69 = arith.truncf %66 : vector<8x8xf32> to vector<8x8xbf16>
    %cst_26 = arith.constant dense<0.000000e+00> : vector<8x4xf32>
    %70 = tpu.matmul %69, %60, %cst_26 {dimension_numbers = #tpu.dot_dimension_numbers<[1], [0], [0], [1], [0, 0, 1, 1], [], []>} : vector<8x8xbf16>, vector<8x4xbf16>, vector<8x4xf32> -> vector<8x4xf32>
    %71 = tpu.reciprocal %68 {approx = true} : vector<8x1xf32> -> vector<8x1xf32>
    %72 = vector.broadcast %71 : vector<8x1xf32> to vector<8x4xf32>
    %73 = arith.mulf %70, %72 : vector<8x4xf32>
    %c0_27 = arith.constant 0 : index
    %c8 = arith.constant 8 : index
    %74 = vector.load %arg8[%c0_27, %c8] : memref<8x128xf32, #tpu.memory_space<vmem>>, vector<8x4xf32>
    tpu.vector_store %arg8[%c0_27, %c8], %73 {strides = array<i32>} : memref<8x128xf32, #tpu.memory_space<vmem>>, vector<8x4xf32>,
    %75 = vector.extract_strided_slice %10 {offsets = [0, 12], sizes = [8, 4], strides = [1, 1]} : vector<8x128xf32> to vector<8x4xf32>
    %76 = arith.truncf %75 : vector<8x4xf32> to vector<8x4xbf16>
    %77 = vector.extract_strided_slice %11 {offsets = [0, 12], sizes = [8, 4], strides = [1, 1]} : vector<8x128xf32> to vector<8x4xf32>
    %78 = arith.truncf %77 : vector<8x4xf32> to vector<8x4xbf16>
    %79 = vector.extract_strided_slice %12 {offsets = [0, 12], sizes = [8, 4], strides = [1, 1]} : vector<8x128xf32> to vector<8x4xf32>
    %80 = arith.truncf %79 : vector<8x4xf32> to vector<8x4xbf16>
    %cst_28 = arith.constant dense<0.000000e+00> : vector<8x8xf32>
    %81 = tpu.matmul %76, %78, %cst_28 {dimension_numbers = #tpu.dot_dimension_numbers<[1], [1], [0], [0], [0, 0, 1, 0], [], []>} : vector<8x4xbf16>, vector<8x4xbf16>, vector<8x8xf32> -> vector<8x8xf32>
    %cst_29 = arith.constant dense<0xFF800000> : vector<8xf32>
    %82 = vector.multi_reduction <maximumf>, %81, %cst_29 [1] : vector<8x8xf32> to vector<8xf32>
    %83 = vector.shape_cast %82 : vector<8xf32> to vector<8x1xf32>
    %84 = vector.broadcast %83 : vector<8x1xf32> to vector<8x8xf32>
    %85 = arith.subf %81, %84 : vector<8x8xf32>
    %86 = math.exp %85 : vector<8x8xf32>
    %cst_30 = arith.constant dense<0.000000e+00> : vector<8xf32>
    %87 = vector.multi_reduction <add>, %86, %cst_30 [1] : vector<8x8xf32> to vector<8xf32>
    %88 = vector.shape_cast %87 : vector<8xf32> to vector<8x1xf32>
    %89 = arith.truncf %86 : vector<8x8xf32> to vector<8x8xbf16>
    %cst_31 = arith.constant dense<0.000000e+00> : vector<8x4xf32>
    %90 = tpu.matmul %89, %80, %cst_31 {dimension_numbers = #tpu.dot_dimension_numbers<[1], [0], [0], [1], [0, 0, 1, 1], [], []>} : vector<8x8xbf16>, vector<8x4xbf16>, vector<8x4xf32> -> vector<8x4xf32>
    %91 = tpu.reciprocal %88 {approx = true} : vector<8x1xf32> -> vector<8x1xf32>
    %92 = vector.broadcast %91 : vector<8x1xf32> to vector<8x4xf32>
    %93 = arith.mulf %90, %92 : vector<8x4xf32>
    %c0_32 = arith.constant 0 : index
    %c12 = arith.constant 12 : index
    %94 = vector.load %arg8[%c0_32, %c12] : memref<8x128xf32, #tpu.memory_space<vmem>>, vector<8x4xf32>
    tpu.vector_store %arg8[%c0_32, %c12], %93 {strides = array<i32>} : memref<8x128xf32, #tpu.memory_space<vmem>>, vector<8x4xf32>,
    %95 = vector.extract_strided_slice %10 {offsets = [0, 16], sizes = [8, 4], strides = [1, 1]} : vector<8x128xf32> to vector<8x4xf32>
    %96 = arith.truncf %95 : vector<8x4xf32> to vector<8x4xbf16>
    %97 = vector.extract_strided_slice %11 {offsets = [0, 16], sizes = [8, 4], strides = [1, 1]} : vector<8x128xf32> to vector<8x4xf32>
    %98 = arith.truncf %97 : vector<8x4xf32> to vector<8x4xbf16>
    %99 = vector.extract_strided_slice %12 {offsets = [0, 16], sizes = [8, 4], strides = [1, 1]} : vector<8x128xf32> to vector<8x4xf32>
    %100 = arith.truncf %99 : vector<8x4xf32> to vector<8x4xbf16>
    %cst_33 = arith.constant dense<0.000000e+00> : vector<8x8xf32>
    %101 = tpu.matmul %96, %98, %cst_33 {dimension_numbers = #tpu.dot_dimension_numbers<[1], [1], [0], [0], [0, 0, 1, 0], [], []>} : vector<8x4xbf16>, vector<8x4xbf16>, vector<8x8xf32> -> vector<8x8xf32>
    %cst_34 = arith.constant dense<0xFF800000> : vector<8xf32>
    %102 = vector.multi_reduction <maximumf>, %101, %cst_34 [1] : vector<8x8xf32> to vector<8xf32>
    %103 = vector.shape_cast %102 : vector<8xf32> to vector<8x1xf32>
    %104 = vector.broadcast %103 : vector<8x1xf32> to vector<8x8xf32>
    %105 = arith.subf %101, %104 : vector<8x8xf32>
    %106 = math.exp %105 : vector<8x8xf32>
    %cst_35 = arith.constant dense<0.000000e+00> : vector<8xf32>
    %107 = vector.multi_reduction <add>, %106, %cst_35 [1] : vector<8x8xf32> to vector<8xf32>
    %108 = vector.shape_cast %107 : vector<8xf32> to vector<8x1xf32>
    %109 = arith.truncf %106 : vector<8x8xf32> to vector<8x8xbf16>
    %cst_36 = arith.constant dense<0.000000e+00> : vector<8x4xf32>
    %110 = tpu.matmul %109, %100, %cst_36 {dimension_numbers = #tpu.dot_dimension_numbers<[1], [0], [0], [1], [0, 0, 1, 1], [], []>} : vector<8x8xbf16>, vector<8x4xbf16>, vector<8x4xf32> -> vector<8x4xf32>
    %111 = tpu.reciprocal %108 {approx = true} : vector<8x1xf32> -> vector<8x1xf32>
    %112 = vector.broadcast %111 : vector<8x1xf32> to vector<8x4xf32>
    %113 = arith.mulf %110, %112 : vector<8x4xf32>
    %c0_37 = arith.constant 0 : index
    %c16 = arith.constant 16 : index
    %114 = vector.load %arg8[%c0_37, %c16] : memref<8x128xf32, #tpu.memory_space<vmem>>, vector<8x4xf32>
    tpu.vector_store %arg8[%c0_37, %c16], %113 {strides = array<i32>} : memref<8x128xf32, #tpu.memory_space<vmem>>, vector<8x4xf32>,
    %115 = vector.extract_strided_slice %10 {offsets = [0, 20], sizes = [8, 4], strides = [1, 1]} : vector<8x128xf32> to vector<8x4xf32>
    %116 = arith.truncf %115 : vector<8x4xf32> to vector<8x4xbf16>
    %117 = vector.extract_strided_slice %11 {offsets = [0, 20], sizes = [8, 4], strides = [1, 1]} : vector<8x128xf32> to vector<8x4xf32>
    %118 = arith.truncf %117 : vector<8x4xf32> to vector<8x4xbf16>
    %119 = vector.extract_strided_slice %12 {offsets = [0, 20], sizes = [8, 4], strides = [1, 1]} : vector<8x128xf32> to vector<8x4xf32>
    %120 = arith.truncf %119 : vector<8x4xf32> to vector<8x4xbf16>
    %cst_38 = arith.constant dense<0.000000e+00> : vector<8x8xf32>
    %121 = tpu.matmul %116, %118, %cst_38 {dimension_numbers = #tpu.dot_dimension_numbers<[1], [1], [0], [0], [0, 0, 1, 0], [], []>} : vector<8x4xbf16>, vector<8x4xbf16>, vector<8x8xf32> -> vector<8x8xf32>
    %cst_39 = arith.constant dense<0xFF800000> : vector<8xf32>
    %122 = vector.multi_reduction <maximumf>, %121, %cst_39 [1] : vector<8x8xf32> to vector<8xf32>
    %123 = vector.shape_cast %122 : vector<8xf32> to vector<8x1xf32>
    %124 = vector.broadcast %123 : vector<8x1xf32> to vector<8x8xf32>
    %125 = arith.subf %121, %124 : vector<8x8xf32>
    %126 = math.exp %125 : vector<8x8xf32>
    %cst_40 = arith.constant dense<0.000000e+00> : vector<8xf32>
    %127 = vector.multi_reduction <add>, %126, %cst_40 [1] : vector<8x8xf32> to vector<8xf32>
    %128 = vector.shape_cast %127 : vector<8xf32> to vector<8x1xf32>
    %129 = arith.truncf %126 : vector<8x8xf32> to vector<8x8xbf16>
    %cst_41 = arith.constant dense<0.000000e+00> : vector<8x4xf32>
    %130 = tpu.matmul %129, %120, %cst_41 {dimension_numbers = #tpu.dot_dimension_numbers<[1], [0], [0], [1], [0, 0, 1, 1], [], []>} : vector<8x8xbf16>, vector<8x4xbf16>, vector<8x4xf32> -> vector<8x4xf32>
    %131 = tpu.reciprocal %128 {approx = true} : vector<8x1xf32> -> vector<8x1xf32>
    %132 = vector.broadcast %131 : vector<8x1xf32> to vector<8x4xf32>
    %133 = arith.mulf %130, %132 : vector<8x4xf32>
    %c0_42 = arith.constant 0 : index
    %c20 = arith.constant 20 : index
    %134 = vector.load %arg8[%c0_42, %c20] : memref<8x128xf32, #tpu.memory_space<vmem>>, vector<8x4xf32>
    tpu.vector_store %arg8[%c0_42, %c20], %133 {strides = array<i32>} : memref<8x128xf32, #tpu.memory_space<vmem>>, vector<8x4xf32>,
    %135 = vector.extract_strided_slice %10 {offsets = [0, 24], sizes = [8, 4], strides = [1, 1]} : vector<8x128xf32> to vector<8x4xf32>
    %136 = arith.truncf %135 : vector<8x4xf32> to vector<8x4xbf16>
    %137 = vector.extract_strided_slice %11 {offsets = [0, 24], sizes = [8, 4], strides = [1, 1]} : vector<8x128xf32> to vector<8x4xf32>
    %138 = arith.truncf %137 : vector<8x4xf32> to vector<8x4xbf16>
    %139 = vector.extract_strided_slice %12 {offsets = [0, 24], sizes = [8, 4], strides = [1, 1]} : vector<8x128xf32> to vector<8x4xf32>
    %140 = arith.truncf %139 : vector<8x4xf32> to vector<8x4xbf16>
    %cst_43 = arith.constant dense<0.000000e+00> : vector<8x8xf32>
    %141 = tpu.matmul %136, %138, %cst_43 {dimension_numbers = #tpu.dot_dimension_numbers<[1], [1], [0], [0], [0, 0, 1, 0], [], []>} : vector<8x4xbf16>, vector<8x4xbf16>, vector<8x8xf32> -> vector<8x8xf32>
    %cst_44 = arith.constant dense<0xFF800000> : vector<8xf32>
    %142 = vector.multi_reduction <maximumf>, %141, %cst_44 [1] : vector<8x8xf32> to vector<8xf32>
    %143 = vector.shape_cast %142 : vector<8xf32> to vector<8x1xf32>
    %144 = vector.broadcast %143 : vector<8x1xf32> to vector<8x8xf32>
    %145 = arith.subf %141, %144 : vector<8x8xf32>
    %146 = math.exp %145 : vector<8x8xf32>
    %cst_45 = arith.constant dense<0.000000e+00> : vector<8xf32>
    %147 = vector.multi_reduction <add>, %146, %cst_45 [1] : vector<8x8xf32> to vector<8xf32>
    %148 = vector.shape_cast %147 : vector<8xf32> to vector<8x1xf32>
    %149 = arith.truncf %146 : vector<8x8xf32> to vector<8x8xbf16>
    %cst_46 = arith.constant dense<0.000000e+00> : vector<8x4xf32>
    %150 = tpu.matmul %149, %140, %cst_46 {dimension_numbers = #tpu.dot_dimension_numbers<[1], [0], [0], [1], [0, 0, 1, 1], [], []>} : vector<8x8xbf16>, vector<8x4xbf16>, vector<8x4xf32> -> vector<8x4xf32>
    %151 = tpu.reciprocal %148 {approx = true} : vector<8x1xf32> -> vector<8x1xf32>
    %152 = vector.broadcast %151 : vector<8x1xf32> to vector<8x4xf32>
    %153 = arith.mulf %150, %152 : vector<8x4xf32>
    %c0_47 = arith.constant 0 : index
    %c24 = arith.constant 24 : index
    %154 = vector.load %arg8[%c0_47, %c24] : memref<8x128xf32, #tpu.memory_space<vmem>>, vector<8x4xf32>
    tpu.vector_store %arg8[%c0_47, %c24], %153 {strides = array<i32>} : memref<8x128xf32, #tpu.memory_space<vmem>>, vector<8x4xf32>,
    %155 = vector.extract_strided_slice %10 {offsets = [0, 28], sizes = [8, 4], strides = [1, 1]} : vector<8x128xf32> to vector<8x4xf32>
    %156 = arith.truncf %155 : vector<8x4xf32> to vector<8x4xbf16>
    %157 = vector.extract_strided_slice %11 {offsets = [0, 28], sizes = [8, 4], strides = [1, 1]} : vector<8x128xf32> to vector<8x4xf32>
    %158 = arith.truncf %157 : vector<8x4xf32> to vector<8x4xbf16>
    %159 = vector.extract_strided_slice %12 {offsets = [0, 28], sizes = [8, 4], strides = [1, 1]} : vector<8x128xf32> to vector<8x4xf32>
    %160 = arith.truncf %159 : vector<8x4xf32> to vector<8x4xbf16>
    %cst_48 = arith.constant dense<0.000000e+00> : vector<8x8xf32>
    %161 = tpu.matmul %156, %158, %cst_48 {dimension_numbers = #tpu.dot_dimension_numbers<[1], [1], [0], [0], [0, 0, 1, 0], [], []>} : vector<8x4xbf16>, vector<8x4xbf16>, vector<8x8xf32> -> vector<8x8xf32>
    %cst_49 = arith.constant dense<0xFF800000> : vector<8xf32>
    %162 = vector.multi_reduction <maximumf>, %161, %cst_49 [1] : vector<8x8xf32> to vector<8xf32>
    %163 = vector.shape_cast %162 : vector<8xf32> to vector<8x1xf32>
    %164 = vector.broadcast %163 : vector<8x1xf32> to vector<8x8xf32>
    %165 = arith.subf %161, %164 : vector<8x8xf32>
    %166 = math.exp %165 : vector<8x8xf32>
    %cst_50 = arith.constant dense<0.000000e+00> : vector<8xf32>
    %167 = vector.multi_reduction <add>, %166, %cst_50 [1] : vector<8x8xf32> to vector<8xf32>
    %168 = vector.shape_cast %167 : vector<8xf32> to vector<8x1xf32>
    %169 = arith.truncf %166 : vector<8x8xf32> to vector<8x8xbf16>
    %cst_51 = arith.constant dense<0.000000e+00> : vector<8x4xf32>
    %170 = tpu.matmul %169, %160, %cst_51 {dimension_numbers = #tpu.dot_dimension_numbers<[1], [0], [0], [1], [0, 0, 1, 1], [], []>} : vector<8x8xbf16>, vector<8x4xbf16>, vector<8x4xf32> -> vector<8x4xf32>
    %171 = tpu.reciprocal %168 {approx = true} : vector<8x1xf32> -> vector<8x1xf32>
    %172 = vector.broadcast %171 : vector<8x1xf32> to vector<8x4xf32>
    %173 = arith.mulf %170, %172 : vector<8x4xf32>
    %c0_52 = arith.constant 0 : index
    %c28 = arith.constant 28 : index
    %174 = vector.load %arg8[%c0_52, %c28] : memref<8x128xf32, #tpu.memory_space<vmem>>, vector<8x4xf32>
    tpu.vector_store %arg8[%c0_52, %c28], %173 {strides = array<i32>} : memref<8x128xf32, #tpu.memory_space<vmem>>, vector<8x4xf32>,
    %c0_53 = arith.constant 0 : index
    %c0_54 = arith.constant 0 : index
    %175 = vector.load %arg7[%c0_53, %c0_54] : memref<8x128xf32, #tpu.memory_space<vmem>>, vector<8x128xf32>
    %c0_55 = arith.constant 0 : index
    %c0_56 = arith.constant 0 : index
    %176 = vector.load %arg8[%c0_55, %c0_56] : memref<8x128xf32, #tpu.memory_space<vmem>>, vector<8x128xf32>
    %177 = arith.truncf %176 : vector<8x128xf32> to vector<8x128xbf16>
    %cst_57 = arith.constant dense<0.000000e+00> : vector<8x128xf32>
    %178 = tpu.matmul %177, %8, %cst_57 {dimension_numbers = #tpu.dot_dimension_numbers<[1], [0], [0], [1], [0, 0, 1, 1], [], []>} : vector<8x128xbf16>, vector<128x128xbf16>, vector<8x128xf32> -> vector<8x128xf32>
    %179 = arith.addf %175, %178 : vector<8x128xf32>
    %c0_58 = arith.constant 0 : index
    %c0_59 = arith.constant 0 : index
    %180 = vector.load %arg7[%c0_58, %c0_59] : memref<8x128xf32, #tpu.memory_space<vmem>>, vector<8x128xf32>
    tpu.vector_store %arg7[%c0_58, %c0_59], %179 {strides = array<i32>} : memref<8x128xf32, #tpu.memory_space<vmem>>, vector<8x128xf32>,
    %c0_i32_60 = arith.constant 0 : i32
    %181 = arith.cmpi eq, %arg1, %c0_i32_60 : i32
    %182 = arith.extui %181 : i1 to i32
    %c0_i32_61 = arith.constant 0 : i32
    %183 = arith.cmpi ne, %182, %c0_i32_61 : i32
    scf.if %183 {
      %c0_62 = arith.constant 0 : index
      %c0_63 = arith.constant 0 : index
      %184 = vector.load %arg7[%c0_62, %c0_63] : memref<8x128xf32, #tpu.memory_space<vmem>>, vector<8x128xf32>
      %c0_64 = arith.constant 0 : index
      %c0_65 = arith.constant 0 : index
      %185 = vector.load %arg5[%c0_64, %c0_65] : memref<1x128xf32, #tpu.memory_space<vmem>>, vector<1x128xf32>
      %186 = vector.broadcast %185 : vector<1x128xf32> to vector<8x128xf32>
      %187 = arith.addf %184, %186 : vector<8x128xf32>
      %c0_66 = arith.constant 0 : index
      %c0_67 = arith.constant 0 : index
      %c0_68 = arith.constant 0 : index
      %188 = vector.load %arg6[%c0_66, %c0_67, %c0_68] : memref<1x8x128xf32, #tpu.memory_space<vmem>>, vector<1x8x128xf32>
      %189 = vector.shape_cast %188 : vector<1x8x128xf32> to vector<8x128xf32>
      %190 = vector.shape_cast %187 : vector<8x128xf32> to vector<1x8x128xf32>
      tpu.vector_store %arg6[%c0_66, %c0_67, %c0_68], %190 {strides = array<i32>} : memref<1x8x128xf32, #tpu.memory_space<vmem>>, vector<1x8x128xf32>,
    } else {
    }
    return
  }
  func.func @transform_0(%arg0: i32, %arg1: i32) -> (i32, i32, i32) {
    %c0_i32 = arith.constant 0 : i32
    %c0_i32_0 = arith.constant 0 : i32
    %c0_i32_1 = arith.constant 0 : i32
    return %arg0, %c0_i32, %c0_i32_0 : i32, i32, i32
  }
  func.func @transform_1(%arg0: i32, %arg1: i32) -> (i32, i32, i32) {
    %c0_i32 = arith.constant 0 : i32
    %c0_i32_0 = arith.constant 0 : i32
    %c0_i32_1 = arith.constant 0 : i32
    return %arg1, %c0_i32, %c0_i32_0 : i32, i32, i32
  }
  func.func @transform_2(%arg0: i32, %arg1: i32) -> (i32, i32, i32) {
    %c0_i32 = arith.constant 0 : i32
    %c0_i32_0 = arith.constant 0 : i32
    %c0_i32_1 = arith.constant 0 : i32
    return %arg1, %c0_i32, %c0_i32_0 : i32, i32, i32
  }
  func.func @transform_3(%arg0: i32, %arg1: i32) -> (i32, i32) {
    %c0_i32 = arith.constant 0 : i32
    %c0_i32_0 = arith.constant 0 : i32
    %c0_i32_1 = arith.constant 0 : i32
    return %c0_i32, %c0_i32_0 : i32, i32
  }
  func.func @transform_4(%arg0: i32, %arg1: i32) -> (i32, i32, i32) {
    %c0_i32 = arith.constant 0 : i32
    %c0_i32_0 = arith.constant 0 : i32
    %c0_i32_1 = arith.constant 0 : i32
    return %arg0, %c0_i32, %c0_i32_0 : i32, i32, i32
  }
}

</mosaic_0001>

<llo_original>
// kernel: tpu_custom_call.1
$region0: #{tpu_custom_call.1}
  #allocation0 [shape = 'u32[]', space=smem, size = 0x4, offset = 0x4, fixed_abs, tag = 'smem constant byte address 0x4 - core index']
  #allocation1 [shape = 'u32[144,128]{1,0:T(1,128)}', space=vmem, size = 0x12000, scoped, tag = 'internal scratch']
  #allocation2 [shape = 'f32[8,128]{1,0:T(8,128)}', space=vmem, size = 0x1000, scoped, tag = 'scratch operand']
  #allocation3 [shape = 'f32[8,128]{1,0:T(8,128)}', space=vmem, size = 0x1000, scoped, tag = 'scratch operand']
  %s0 = inlined_call_operand.hbm [shape: bf16[2,8,128], index: 0, kind: input, shape index: {}]
  %s1 = inlined_call_operand.hbm [shape: bf16[1,128,384], index: 1, kind: input, shape index: {}]
  %s2 = inlined_call_operand.hbm [shape: bf16[1,128,128], index: 2, kind: input, shape index: {}]
  %s3 = inlined_call_operand.vmem [shape: f32[1,128], index: 3, kind: input, shape index: {}]
  %s4 = inlined_call_operand.hbm [shape: f32[2,8,128], index: 4, kind: output, shape index: {}]
  %s5 = sld [smem:[#allocation0]]
  $region69: #{tpu_custom_call.1} parent=0
    _
  %s7 = ssub.s32 1, %s5
  %s8 = scalar_select 0, %s7, %s5
  $region1: #{tpu_custom_call.1} parent=0
    #allocation4 [shape = 'u8[4096]{0}', space=vmem, size = 0x1000, scoped, tag = 'input window, operand 0']
    #allocation5 [shape = 's32[2]{0}', space=sflag, size = 0x8, scoped, tag = 'scoped memory for tpu_custom_call.1']
    #allocation6 [shape = 's32[2]{0}', space=sflag, size = 0x8, scoped, tag = 'scoped memory for tpu_custom_call.1']
    #allocation7 [shape = 'u8[98304]{0}', space=vmem, size = 0x18000, scoped, tag = 'input window, operand 1, single buffered']
    #allocation8 [shape = 's32[1]{0}', space=sflag, size = 0x4, scoped, tag = 'scoped memory for tpu_custom_call.1']
    #allocation9 [shape = 'u8[32768]{0}', space=vmem, size = 0x8000, scoped, tag = 'input window, operand 2, single buffered']
    #allocation10 [shape = 'u8[8192]{0}', space=vmem, size = 0x2000, scoped, tag = 'output window, operand 0']
    %9 = vsyncpa [#allocation5], 0
    %s10 = scalar_lea.sflag [#allocation5], 1
    %11 = vsyncpa %s10, 0
    %12 = vsyncpa [#allocation8], 0
    %13 = vsyncpa [#allocation6], 0
    %s14 = scalar_lea.sflag [#allocation6], 1
    %15 = vsyncpa %s14, 0
    loop: start=0, step=1, limit=4
    $region2: #{tpu_custom_call.1} parent=1 // loop_pre_header
      _
    $region3: #{tpu_custom_call.1} parent=1 // loop_header
      %s17 = sphi 0, %s21
      %p18 = scmp.ge.s32.totalorder %s17, 4
      %s24 = sphi 0, %s36
      %s25 = sphi 0, %s32
      %s26 = sphi 0, %s24
      %s27 = sphi 0, %s25
      %s28 = sphi 0, %s26
      %s29 = sphi 0, %s27
      %s39 = sphi 0, %s41
      %s42 = sphi 0, %s39
      %s43 = sphi 0, %s42
      %s59 = sphi 0, %s43
      %s65 = sphi 0, %s67
      %s68 = sphi 0, %s65
      %s69 = sphi 0, %s68
      %s85 = sphi 0, %s69
      %s91 = sphi 0, %s93
      %s94 = sphi 0, %s91
      %s95 = sphi 0, %s94
      %s111 = sphi 0, %s95
      %s115 = sphi 0, %s115
      %s117 = sphi 0, %s115
      %s118 = sphi 0, %s117
      %s132 = sphi 0, %s118
      %s138 = sphi 0, %s140
      %s141 = sphi 0, %s138
      %s142 = sphi 0, %s141
      %s158 = sphi 0, %s142
    $region4: #{tpu_custom_call.1} parent=1 // loop_header_branch
      %20 = sbr.rel (%p18) target = $region8
    $region5: #{tpu_custom_call.1} parent=1 // loop_body
      %s22 = ssub.s32 %s17, 1
      %s23 = ssub.s32 %s17, 2
      %s30 = sadd.s32 1, %s25
      %p31 = scmp.ge.s32.totalorder %s30, 1
      %s32 = scalar_select %p31, 0, %s30
      %s33 = sadd.s32 1, %s24
      %s34 = scalar_select %p31, %s33, %s24
      %p35 = scmp.ge.s32.totalorder %s34, 2
      %s36 = scalar_select %p35, 0, %s34
      %s37 = ssub.s32 %s24, %s36
      %p38 = scmp.eq.s32.totalorder %s37, 0
      %s40 = sadd.s32 %s39, 1
      %s41 = scalar_select %p38, %s39, %s40
      %p44 = pneg %p38
      %p45 = scmp.eq.s32.totalorder %s17, 1
      %p46 = por %p44, %p45
      %p47 = scmp.ne.s32.totalorder %s39, %s42
      %p48 = scmp.eq.s32.totalorder %s17, 0
      %p49 = por %p47, %p48
      %p50 = scmp.ne.s32.totalorder %s39, %s42
      %p51 = scmp.eq.s32.totalorder %s22, 1
      %p52 = por %p50, %p51
      %p53 = scmp.ne.s32.totalorder %s42, %s43
      %p54 = scmp.eq.s32.totalorder %s22, 0
      %p55 = por %p53, %p54
      %p56 = scmp.ne.s32.totalorder %s42, %s43
      %p57 = scmp.eq.s32.totalorder %s23, 1
      %p58 = por %p56, %p57
      %p60 = scmp.ne.s32.totalorder %s43, %s59
      %p61 = scmp.eq.s32.totalorder %s23, 0
      %p62 = por %p60, %p61
      %s63 = ssub.s32 %s25, %s32
      %p64 = scmp.eq.s32.totalorder %s63, 0
      %s66 = sadd.s32 %s65, 1
      %s67 = scalar_select %p64, %s65, %s66
      %p70 = pneg %p64
      %p71 = scmp.eq.s32.totalorder %s17, 1
      %p72 = por %p70, %p71
      %p73 = scmp.ne.s32.totalorder %s65, %s68
      %p74 = scmp.eq.s32.totalorder %s17, 0
      %p75 = por %p73, %p74
      %p76 = scmp.ne.s32.totalorder %s65, %s68
      %p77 = scmp.eq.s32.totalorder %s22, 1
      %p78 = por %p76, %p77
      %p79 = scmp.ne.s32.totalorder %s68, %s69
      %p80 = scmp.eq.s32.totalorder %s22, 0
      %p81 = por %p79, %p80
      %p82 = scmp.ne.s32.totalorder %s68, %s69
      %p83 = scmp.eq.s32.totalorder %s23, 1
      %p84 = por %p82, %p83
      %p86 = scmp.ne.s32.totalorder %s69, %s85
      %p87 = scmp.eq.s32.totalorder %s23, 0
      %p88 = por %p86, %p87
      %s89 = ssub.s32 %s25, %s32
      %p90 = scmp.eq.s32.totalorder %s89, 0
      %s92 = sadd.s32 %s91, 1
      %s93 = scalar_select %p90, %s91, %s92
      %p96 = pneg %p90
      %p97 = scmp.eq.s32.totalorder %s17, 1
      %p98 = por %p96, %p97
      %p99 = scmp.ne.s32.totalorder %s91, %s94
      %p100 = scmp.eq.s32.totalorder %s17, 0
      %p101 = por %p99, %p100
      %p102 = scmp.ne.s32.totalorder %s91, %s94
      %p103 = scmp.eq.s32.totalorder %s22, 1
      %p104 = por %p102, %p103
      %p105 = scmp.ne.s32.totalorder %s94, %s95
      %p106 = scmp.eq.s32.totalorder %s22, 0
      %p107 = por %p105, %p106
      %p108 = scmp.ne.s32.totalorder %s94, %s95
      %p109 = scmp.eq.s32.totalorder %s23, 1
      %p110 = por %p108, %p109
      %p112 = scmp.ne.s32.totalorder %s95, %s111
      %p113 = scmp.eq.s32.totalorder %s23, 0
      %p114 = por %p112, %p113
      %s116 = sadd.s32 %s115, 1
      %p119 = scmp.eq.s32.totalorder %s17, 1
      %p120 = scmp.ne.s32.totalorder %s115, %s117
      %p121 = scmp.eq.s32.totalorder %s17, 0
      %p122 = por %p120, %p121
      %p123 = scmp.ne.s32.totalorder %s115, %s117
      %p124 = scmp.eq.s32.totalorder %s22, 1
      %p125 = por %p123, %p124
      %p126 = scmp.ne.s32.totalorder %s117, %s118
      %p127 = scmp.eq.s32.totalorder %s22, 0
      %p128 = por %p126, %p127
      %p129 = scmp.ne.s32.totalorder %s117, %s118
      %p130 = scmp.eq.s32.totalorder %s23, 1
      %p131 = por %p129, %p130
      %p133 = scmp.ne.s32.totalorder %s118, %s132
      %p134 = scmp.eq.s32.totalorder %s23, 0
      %p135 = por %p133, %p134
      %s136 = ssub.s32 %s24, %s36
      %p137 = scmp.eq.s32.totalorder %s136, 0
      %s139 = sadd.s32 %s138, 1
      %s140 = scalar_select %p137, %s138, %s139
      %p143 = pneg %p137
      %p144 = scmp.eq.s32.totalorder %s17, 1
      %p145 = por %p143, %p144
      %p146 = scmp.ne.s32.totalorder %s138, %s141
      %p147 = scmp.eq.s32.totalorder %s17, 0
      %p148 = por %p146, %p147
      %p149 = scmp.ne.s32.totalorder %s138, %s141
      %p150 = scmp.eq.s32.totalorder %s22, 1
      %p151 = por %p149, %p150
      %p152 = scmp.ne.s32.totalorder %s141, %s142
      %p153 = scmp.eq.s32.totalorder %s22, 0
      %p154 = por %p152, %p153
      %p155 = scmp.ne.s32.totalorder %s141, %s142
      %p156 = scmp.eq.s32.totalorder %s23, 1
      %p157 = por %p155, %p156
      %p159 = scmp.ne.s32.totalorder %s142, %s158
      %p160 = scmp.eq.s32.totalorder %s23, 0
      %p161 = por %p159, %p160
      %p162 = scmp.le.s32.totalorder 1, %s17
      %p163 = scmp.lt.s32.totalorder %s17, 3
      %p164 = pnand %p162, %p163
      %p165 = pneg %p164
      // Predicated region
      $region9: #{tpu_custom_call.1} parent=5 // pred_check
        _
      $region10: #{tpu_custom_call.1} parent=5 // pred_check_branch
        %167 = sbr.rel (%p164) target = $region12
      $region11: #{tpu_custom_call.1} parent=5 // pred_region
        %s168 = ssub.s32 %s17, 1
        // Predicated region
        $region13: #{tpu_custom_call.1} parent=11 // pred_check
          %p169 = pneg %p81
        $region14: #{tpu_custom_call.1} parent=11 // pred_check_branch
          %171 = sbr.rel (%p169) target = $region16
        $region15: #{tpu_custom_call.1} parent=11 // pred_region
          %s173 = ssub.s32 3072, 3072
          %174 = vsyncadd [#allocation8], %s173
          %s175 = smul.addr %s27, 48
          %s176 = smul.addr %s175, 64
          %s177 = scalar_lea.hbm %s1, %s176
          %s178 = sshll.u32 [#allocation7], 4
          %s179 = int_to_ptr.vmem [resolvable:$true] %s178
          %184 = dma.hbm_to_vmem [thread:$0]  %s177, 3072, %s179, [#allocation8], 192, 192, 12
        $region16: #{tpu_custom_call.1} parent=11 // pred_fallthru
          _
        // Predicated region
        $region17: #{tpu_custom_call.1} parent=11 // pred_check
          %p185 = pneg %p107
        $region18: #{tpu_custom_call.1} parent=11 // pred_check_branch
          %187 = sbr.rel (%p185) target = $region20
        $region19: #{tpu_custom_call.1} parent=11 // pred_region
          %s189 = ssub.s32 1024, 1024
          %190 = vsyncadd [#allocation8], %s189
          %s191 = smul.addr %s27, 16
          %s192 = smul.addr %s191, 64
          %s193 = scalar_lea.hbm %s2, %s192
          %s194 = sshll.u32 [#allocation9], 4
          %s195 = int_to_ptr.vmem [resolvable:$true] %s194
          %200 = dma.hbm_to_vmem [thread:$0]  %s193, 1024, %s195, [#allocation8], 64, 64, 4
        $region20: #{tpu_custom_call.1} parent=11 // pred_fallthru
          _
        // Predicated region
        $region21: #{tpu_custom_call.1} parent=11 // pred_check
          %p201 = pneg %p128
        $region22: #{tpu_custom_call.1} parent=11 // pred_check_branch
          %203 = sbr.rel (%p201) target = $region24
        $region23: #{tpu_custom_call.1} parent=11 // pred_region
          _
        $region24: #{tpu_custom_call.1} parent=11 // pred_fallthru
          _
      $region12: #{tpu_custom_call.1} parent=5 // pred_fallthru
        _
      %p204 = scmp.lt.s32.totalorder %s17, 2
      // Predicated region
      $region25: #{tpu_custom_call.1} parent=5 // pred_check
        %p205 = pneg %p204
      $region26: #{tpu_custom_call.1} parent=5 // pred_check_branch
        %207 = sbr.rel (%p205) target = $region28
      $region27: #{tpu_custom_call.1} parent=5 // pred_region
        // Predicated region
        $region29: #{tpu_custom_call.1} parent=27 // pred_check
          %p208 = pneg %p49
        $region30: #{tpu_custom_call.1} parent=27 // pred_check_branch
          %210 = sbr.rel (%p208) target = $region32
        $region31: #{tpu_custom_call.1} parent=27 // pred_region
          %s211 = sand.u32 %s39, 1
          %s212 = scalar_lea.sflag [#allocation5], %s211
          %s213 = sand.u32 %s39, 1
          %s214 = smul.addr %s213, 4
          %s215 = scalar_lea.vmem [#allocation4], %s214
          %s217 = ssub.s32 64, 64
          %218 = vsyncadd %s212, %s217
          %s219 = smul.addr %s24, 64
          %s220 = scalar_lea.hbm %s0, %s219
          %s222 = sshll.u32 %s215, 4
          %s223 = int_to_ptr.vmem [resolvable:$true] %s222
          %225 = dma.hbm_to_vmem [thread:$0]  %s220, 64, %s223, %s212
        $region32: #{tpu_custom_call.1} parent=27 // pred_fallthru
          _
      $region28: #{tpu_custom_call.1} parent=5 // pred_fallthru
        _
      %p226 = scmp.le.s32.totalorder 1, %s17
      %p227 = scmp.lt.s32.totalorder %s17, 3
      %p228 = pnand %p226, %p227
      %p229 = pneg %p228
      // Predicated region
      $region33: #{tpu_custom_call.1} parent=5 // pred_check
        _
      $region34: #{tpu_custom_call.1} parent=5 // pred_check_branch
        %231 = sbr.rel (%p228) target = $region36
      $region35: #{tpu_custom_call.1} parent=5 // pred_region
        %s232 = ssub.s32 %s17, 1
        %s233 = sand.u32 %s42, 1
        %s234 = scalar_lea.sflag [#allocation5], %s233
        %s235 = sand.u32 %s42, 1
        %s236 = smul.addr %s235, 4
        %s237 = scalar_lea.vmem [#allocation4], %s236
        // Predicated region
        $region37: #{tpu_custom_call.1} parent=35 // pred_check
          %p238 = pneg %p55
        $region38: #{tpu_custom_call.1} parent=35 // pred_check_branch
          %240 = sbr.rel (%p238) target = $region40
        $region39: #{tpu_custom_call.1} parent=35 // pred_region
          %241 = dma.done %s234, 64
        $region40: #{tpu_custom_call.1} parent=35 // pred_fallthru
          _
        // Predicated region
        $region41: #{tpu_custom_call.1} parent=35 // pred_check
          %p242 = pneg %p81
        $region42: #{tpu_custom_call.1} parent=35 // pred_check_branch
          %244 = sbr.rel (%p242) target = $region44
        $region43: #{tpu_custom_call.1} parent=35 // pred_region
          %245 = dma.done [#allocation8], 3072
        $region44: #{tpu_custom_call.1} parent=35 // pred_fallthru
          _
        // Predicated region
        $region45: #{tpu_custom_call.1} parent=35 // pred_check
          %p246 = pneg %p107
        $region46: #{tpu_custom_call.1} parent=35 // pred_check_branch
          %248 = sbr.rel (%p246) target = $region48
        $region47: #{tpu_custom_call.1} parent=35 // pred_region
          %249 = dma.done [#allocation8], 1024
        $region48: #{tpu_custom_call.1} parent=35 // pred_fallthru
          _
        %s250 = sand.u32 %s42, 1
        %s251 = scalar_lea.sflag [#allocation5], %s250
        %s252 = sand.u32 %s42, 1
        %s253 = smul.addr %s252, 4
        %s254 = scalar_lea.vmem [#allocation4], %s253
        %p255 = pneg %p55
        %p256 = pneg %p52
        %p257 = pneg %p81
        %p258 = pneg %p78
        %p259 = pneg %p107
        %p260 = pneg %p104
        %p261 = pneg %p128
        %p262 = pneg %p125
        %p263 = pneg %p154
        %p264 = pneg %p151
        %s265 = sand.u32 %s141, 1
        %s266 = scalar_lea.sflag [#allocation6], %s265
        %s267 = sand.u32 %s141, 1
        %s268 = smul.addr %s267, 8
        %s269 = scalar_lea.vmem [#allocation10], %s268
        %p271 = scmp.eq.s32.totalorder %s27, 0
        // Predicated region
        $region49: #{tpu_custom_call.1} parent=35 // pred_check
          %p272 = pneg %p271
        $region50: #{tpu_custom_call.1} parent=35 // pred_check_branch
          %274 = sbr.rel (%p272) target = $region52
        $region51: #{tpu_custom_call.1} parent=35 // pred_region
          %275 = vst [vmem:[#allocation2] sm:$0xff] 0.0
        $region52: #{tpu_custom_call.1} parent=35 // pred_fallthru
          _
        %v276 = vld [vmem:[%s237] sm:$0xf]
        %v277 = vld [vmem:[#allocation7] sm:$0xff]
        %v278 = vld [vmem:[#allocation7 + $0x8] sm:$0xf]
        %v279 = vld [vmem:[#allocation7 + $0xc] sm:$0xff]
        %v280 = vld [vmem:[#allocation7 + $0x14] sm:$0xf]
        %v281 = vld [vmem:[#allocation7 + $0x18] sm:$0xff]
        %v282 = vld [vmem:[#allocation7 + $0x20] sm:$0xf]
        %v283 = vld [vmem:[#allocation7 + $0x24] sm:$0xff]
        %v284 = vld [vmem:[#allocation7 + $0x2c] sm:$0xf]
        %v285 = vld [vmem:[#allocation7 + $0x30] sm:$0xff]
        %v286 = vld [vmem:[#allocation7 + $0x38] sm:$0xf]
        %v287 = vld [vmem:[#allocation7 + $0x3c] sm:$0xff]
        %v288 = vld [vmem:[#allocation7 + $0x44] sm:$0xf]
        %v289 = vld [vmem:[#allocation7 + $0x48] sm:$0xff]
        %v290 = vld [vmem:[#allocation7 + $0x50] sm:$0xf]
        %v291 = vld [vmem:[#allocation7 + $0x54] sm:$0xff]
        %v292 = vld [vmem:[#allocation7 + $0x5c] sm:$0xf]
        %v293 = vld [vmem:[#allocation7 + $0x60] sm:$0xff]
        %v294 = vld [vmem:[#allocation7 + $0x68] sm:$0xf]
        %v295 = vld [vmem:[#allocation7 + $0x6c] sm:$0xff]
        %v296 = vld [vmem:[#allocation7 + $0x74] sm:$0xf]
        %v297 = vld [vmem:[#allocation7 + $0x78] sm:$0xff]
        %v298 = vld [vmem:[#allocation7 + $0x80] sm:$0xf]
        %v299 = vld [vmem:[#allocation7 + $0x84] sm:$0xff]
        %v300 = vld [vmem:[#allocation7 + $0x8c] sm:$0xf]
        %v301 = vld [vmem:[#allocation7 + $0x90] sm:$0xff]
        %v302 = vld [vmem:[#allocation7 + $0x98] sm:$0xf]
        %v303 = vld [vmem:[#allocation7 + $0x9c] sm:$0xff]
        %v304 = vld [vmem:[#allocation7 + $0xa4] sm:$0xf]
        %v305 = vld [vmem:[#allocation7 + $0xa8] sm:$0xff]
        %v306 = vld [vmem:[#allocation7 + $0xb0] sm:$0xf]
        %v307 = vld [vmem:[#allocation7 + $0xb4] sm:$0xff]
        %v308 = vld [vmem:[#allocation7 + $0xbc] sm:$0xf]
        %v309 = vld [vmem:[#allocation9] sm:$0xf]
        %v310 = vld [vmem:[#allocation9 + $0x4] sm:$0xf]
        %v311 = vld [vmem:[#allocation9 + $0x8] sm:$0xf]
        %v312 = vld [vmem:[#allocation9 + $0xc] sm:$0xf]
        %v313 = vld [vmem:[#allocation9 + $0x10] sm:$0xf]
        %v314 = vld [vmem:[#allocation9 + $0x14] sm:$0xf]
        %v315 = vld [vmem:[#allocation9 + $0x18] sm:$0xf]
        %v316 = vld [vmem:[#allocation9 + $0x1c] sm:$0xf]
        %v317 = vld [vmem:[#allocation9 + $0x20] sm:$0xf]
        %v318 = vld [vmem:[#allocation9 + $0x24] sm:$0xf]
        %v319 = vld [vmem:[#allocation9 + $0x28] sm:$0xf]
        %v320 = vld [vmem:[#allocation9 + $0x2c] sm:$0xf]
        %v321 = vld [vmem:[#allocation9 + $0x30] sm:$0xf]
        %v322 = vld [vmem:[#allocation9 + $0x34] sm:$0xf]
        %v323 = vld [vmem:[#allocation9 + $0x38] sm:$0xf]
        %v324 = vld [vmem:[#allocation9 + $0x3c] sm:$0xf]
        %v357 = vunpack.c.l.b16 %v277
        %v358 = vunpack.c.h.b16 %v277
        %v359 = vunpack.c.l.b16 %v278
        %v360 = vunpack.c.l.b16 %v279
        %v361 = vunpack.c.h.b16 %v279
        %v362 = vunpack.c.l.b16 %v280
        %v363 = vunpack.c.l.b16 %v281
        %v364 = vunpack.c.h.b16 %v281
        %v365 = vunpack.c.l.b16 %v282
        %v366 = vunpack.c.l.b16 %v283
        %v367 = vunpack.c.h.b16 %v283
        %v368 = vunpack.c.l.b16 %v284
        %v369 = vunpack.c.l.b16 %v285
        %v370 = vunpack.c.h.b16 %v285
        %v371 = vunpack.c.l.b16 %v286
        %v372 = vunpack.c.l.b16 %v287
        %v373 = vunpack.c.h.b16 %v287
        %v374 = vunpack.c.l.b16 %v288
        %v375 = vunpack.c.l.b16 %v289
        %v376 = vunpack.c.h.b16 %v289
        %v377 = vunpack.c.l.b16 %v290
        %v378 = vunpack.c.l.b16 %v291
        %v379 = vunpack.c.h.b16 %v291
        %v380 = vunpack.c.l.b16 %v292
        %v381 = vunpack.c.l.b16 %v293
        %v382 = vunpack.c.h.b16 %v293
        %v383 = vunpack.c.l.b16 %v294
        %v384 = vunpack.c.l.b16 %v295
        %v385 = vunpack.c.h.b16 %v295
        %v386 = vunpack.c.l.b16 %v296
        %v387 = vunpack.c.l.b16 %v297
        %v388 = vunpack.c.h.b16 %v297
        %v389 = vunpack.c.l.b16 %v298
        %v390 = vunpack.c.l.b16 %v299
        %v391 = vunpack.c.h.b16 %v299
        %v392 = vunpack.c.l.b16 %v300
        %v393 = vunpack.c.l.b16 %v301
        %v394 = vunpack.c.h.b16 %v301
        %v395 = vunpack.c.l.b16 %v302
        %v396 = vunpack.c.l.b16 %v303
        %v397 = vunpack.c.h.b16 %v303
        %v398 = vunpack.c.l.b16 %v304
        %v399 = vunpack.c.l.b16 %v305
        %v400 = vunpack.c.h.b16 %v305
        %v401 = vunpack.c.l.b16 %v306
        %v402 = vunpack.c.l.b16 %v307
        %v403 = vunpack.c.h.b16 %v307
        %v404 = vunpack.c.l.b16 %v308
        %v405 = vpack.c.b16 %v360, %v357
        %v406 = vpack.c.b16 %v361, %v358
        %v407 = vpack.c.b16 %v362, %v359
        %v408 = vpack.c.b16 %v366, %v363
        %v409 = vpack.c.b16 %v367, %v364
        %v410 = vpack.c.b16 %v368, %v365
        %v411 = vpack.c.b16 %v372, %v369
        %v412 = vpack.c.b16 %v373, %v370
        %v413 = vpack.c.b16 %v374, %v371
        %v414 = vpack.c.b16 %v378, %v375
        %v415 = vpack.c.b16 %v379, %v376
        %v416 = vpack.c.b16 %v380, %v377
        %v417 = vpack.c.b16 %v384, %v381
        %v418 = vpack.c.b16 %v385, %v382
        %v419 = vpack.c.b16 %v386, %v383
        %v420 = vpack.c.b16 %v390, %v387
        %v421 = vpack.c.b16 %v391, %v388
        %v422 = vpack.c.b16 %v392, %v389
        %v423 = vpack.c.b16 %v396, %v393
        %v424 = vpack.c.b16 %v397, %v394
        %v425 = vpack.c.b16 %v398, %v395
        %v426 = vpack.c.b16 %v402, %v399
        %v427 = vpack.c.b16 %v403, %v400
        %v428 = vpack.c.b16 %v404, %v401
        %453 = vmatprep.subr.bf16.mxu0 %v406
        %454 = vmatpush1.bf16.msra.mxu0 %v405
        %455 = vmatprep.subr.bf16.mxu0 %v409
        %456 = vmatpush1.bf16.msra.mxu0 %v408
        %457 = vmatprep.subr.bf16.mxu0 %v412
        %458 = vmatpush1.bf16.msra.mxu0 %v411
        %459 = vmatprep.subr.bf16.mxu0 %v415
        %460 = vmatpush1.bf16.msra.mxu0 %v414
        %461 = vmatprep.subr.bf16.mxu0 %v418
        %462 = vmatpush1.bf16.msra.mxu0 %v417
        %463 = vmatprep.subr.bf16.mxu0 %v421
        %464 = vmatpush1.bf16.msra.mxu0 %v420
        %465 = vmatprep.subr.bf16.mxu0 %v424
        %466 = vmatpush1.bf16.msra.mxu0 %v423
        %467 = vmatprep.subr.bf16.mxu0 %v427
        %468 = vmatpush1.bf16.msra.mxu0 %v426
        %469 = vmatprep.subr.bf16.mxu0 0
        %470 = vmatpush1.bf16.msra.mxu0 0
        %471 = vmatprep.subr.bf16.mxu0 0
        %472 = vmatpush1.bf16.msra.mxu0 0
        %473 = vmatprep.subr.bf16.mxu0 0
        %474 = vmatpush1.bf16.msra.mxu0 0
        %475 = vmatprep.subr.bf16.mxu0 0
        %476 = vmatpush1.bf16.msra.mxu0 0
        %477 = vmatprep.subr.bf16.mxu0 0
        %478 = vmatpush1.bf16.msra.mxu0 0
        %479 = vmatprep.subr.bf16.mxu0 0
        %480 = vmatpush1.bf16.msra.mxu0 0
        %481 = vmatprep.subr.bf16.mxu0 0
        %482 = vmatpush1.bf16.msra.mxu0 0
        %483 = vmatprep.subr.bf16.mxu0 0
        %484 = vmatpush1.bf16.msra.mxu0 0
        %485 = vmatprep.mubr.bf16.mxu0 0
        %486 = vmatmul.mubr.bf16.gmra.mrb[0].mxu0 %v276
        %v487 = vpop.f32.mrb[0].mxu0
        %v488 = vadd.f32 0.0, %v487
        %v489 = vpop.f32.mrb[0].mxu0
        %v490 = vadd.f32 0.0, %v489
        %v491 = vpop.f32.mrb[0].mxu0
        %v492 = vpop.f32.mrb[0].mxu0
        %493 = vdwg.mxu0
        %494 = vmatprep.subr.bf16.mxu0 0
        %495 = vmatpush1.bf16.msra.mxu0 %v407
        %496 = vmatprep.subr.bf16.mxu0 0
        %497 = vmatpush1.bf16.msra.mxu0 %v410
        %498 = vmatprep.subr.bf16.mxu0 0
        %499 = vmatpush1.bf16.msra.mxu0 %v413
        %500 = vmatprep.subr.bf16.mxu0 0
        %501 = vmatpush1.bf16.msra.mxu0 %v416
        %502 = vmatprep.subr.bf16.mxu0 0
        %503 = vmatpush1.bf16.msra.mxu0 %v419
        %504 = vmatprep.subr.bf16.mxu0 0
        %505 = vmatpush1.bf16.msra.mxu0 %v422
        %506 = vmatprep.subr.bf16.mxu0 0
        %507 = vmatpush1.bf16.msra.mxu0 %v425
        %508 = vmatprep.subr.bf16.mxu0 0
        %509 = vmatpush1.bf16.msra.mxu0 %v428
        %510 = vmatprep.subr.bf16.mxu0 0
        %511 = vmatpush1.bf16.msra.mxu0 0
        %512 = vmatprep.subr.bf16.mxu0 0
        %513 = vmatpush1.bf16.msra.mxu0 0
        %514 = vmatprep.subr.bf16.mxu0 0
        %515 = vmatpush1.bf16.msra.mxu0 0
        %516 = vmatprep.subr.bf16.mxu0 0
        %517 = vmatpush1.bf16.msra.mxu0 0
        %518 = vmatprep.subr.bf16.mxu0 0
        %519 = vmatpush1.bf16.msra.mxu0 0
        %520 = vmatprep.subr.bf16.mxu0 0
        %521 = vmatpush1.bf16.msra.mxu0 0
        %522 = vmatprep.subr.bf16.mxu0 0
        %523 = vmatpush1.bf16.msra.mxu0 0
        %524 = vmatprep.subr.bf16.mxu0 0
        %525 = vmatpush1.bf16.msra.mxu0 0
        %526 = vmatprep.mubr.bf16.mxu0 0
        %527 = vmatmul.mubr.bf16.gmra.mrb[0].mxu0 %v276
        %v528 = vpop.f32.mrb[0].mxu0
        %v529 = vadd.f32 0.0, %v528
        %v530 = vpop.f32.mrb[0].mxu0
        %v531 = vpop.f32.mrb[0].mxu0
        %v532 = vpop.f32.mrb[0].mxu0
        %533 = vdwg.mxu0
        %534 = vst [vmem:[#allocation3] sm:$0xff] 0.0
        %v535 = vpack.c.bf16 %v488, %v488
        %v536 = vpack.c.bf16 %v490, %v490
        %v537 = vpack.c.bf16 %v529, %v529
        %vm538 = vcmask 31744
        %v540 = vsel %vm538, %v535, 0
        %v543 = vsel %vm538, %v536, 0
        %545 = vmatprep.subr.bf16.mxu0 0
        %546 = vmatpush1.bf16.xpose.msra.mxu0 %v543
        %547 = vmatprep.subr.bf16.mxu0 0
        %548 = vmatpush1.bf16.xpose.msra.mxu0 0
        %549 = vmatprep.subr.bf16.mxu0 0
        %550 = vmatpush1.bf16.xpose.msra.mxu0 0
        %551 = vmatprep.subr.bf16.mxu0 0
        %552 = vmatpush1.bf16.xpose.msra.mxu0 0
        %553 = vmatprep.subr.bf16.mxu0 0
        %554 = vmatpush1.bf16.xpose.msra.mxu0 0
        %555 = vmatprep.subr.bf16.mxu0 0
        %556 = vmatpush1.bf16.xpose.msra.mxu0 0
        %557 = vmatprep.subr.bf16.mxu0 0
        %558 = vmatpush1.bf16.xpose.msra.mxu0 0
        %559 = vmatprep.subr.bf16.mxu0 0
        %560 = vmatpush1.bf16.xpose.msra.mxu0 0
        %561 = vmatprep.subr.bf16.mxu0 0
        %562 = vmatpush1.bf16.xpose.msra.mxu0 0
        %563 = vmatprep.subr.bf16.mxu0 0
        %564 = vmatpush1.bf16.xpose.msra.mxu0 0
        %565 = vmatprep.subr.bf16.mxu0 0
        %566 = vmatpush1.bf16.xpose.msra.mxu0 0
        %567 = vmatprep.subr.bf16.mxu0 0
        %568 = vmatpush1.bf16.xpose.msra.mxu0 0
        %569 = vmatprep.subr.bf16.mxu0 0
        %570 = vmatpush1.bf16.xpose.msra.mxu0 0
        %571 = vmatprep.subr.bf16.mxu0 0
        %572 = vmatpush1.bf16.xpose.msra.mxu0 0
        %573 = vmatprep.subr.bf16.mxu0 0
        %574 = vmatpush1.bf16.xpose.msra.mxu0 0
        %575 = vmatprep.subr.bf16.mxu0 0
        %576 = vmatpush1.bf16.xpose.msra.mxu0 0
        %577 = vmatprep.mubr.bf16.mxu0 0
        %578 = vmatmul.mubr.bf16.gmra.mrb[0].mxu0 %v540
        %v579 = vpop.f32.mrb[0].mxu0
        %v580 = vadd.f32 0.0, %v579
        %v581 = vpop.f32.mrb[0].mxu0
        %v582 = vpop.f32.mrb[0].mxu0
        %v583 = vpop.f32.mrb[0].mxu0
        %584 = vdwg.mxu0
        %vm585 = vcmask 64512
        %v586 = vsel %vm585, %v580, -inf
        %587 = vmax.xlane.f32.xlu0 %v586
        %v588 = vpop.xlane.xlu0 %587
        %v589 = vsub.f32 %v580, %v588
        %v590 = vmul.f32 %v589, 1.442695
        %v591 = vpow.pop %v590
        %v592 = vsel %vm585, %v591, 0.0
        %593 = vadd.xlane.f32.xlu0 %v592
        %v594 = vpop.xlane.xlu0 %593
        %v595 = vpack.c.bf16 %v591, %v591
        %v597 = vsel %vm585, %v595, 0
        %vm599 = vcmask 1043456
        %v601 = vsel %vm599, %v537, 0
        %603 = vmatprep.subr.bf16.mxu0 0
        %604 = vmatpush1.bf16.msra.mxu0 %v601
        %605 = vmatprep.subr.bf16.mxu0 0
        %606 = vmatpush1.bf16.msra.mxu0 0
        %607 = vmatprep.subr.bf16.mxu0 0
        %608 = vmatpush1.bf16.msra.mxu0 0
        %609 = vmatprep.subr.bf16.mxu0 0
        %610 = vmatpush1.bf16.msra.mxu0 0
        %611 = vmatprep.subr.bf16.mxu0 0
        %612 = vmatpush1.bf16.msra.mxu0 0
        %613 = vmatprep.subr.bf16.mxu0 0
        %614 = vmatpush1.bf16.msra.mxu0 0
        %615 = vmatprep.subr.bf16.mxu0 0
        %616 = vmatpush1.bf16.msra.mxu0 0
        %617 = vmatprep.subr.bf16.mxu0 0
        %618 = vmatpush1.bf16.msra.mxu0 0
        %619 = vmatprep.subr.bf16.mxu0 0
        %620 = vmatpush1.bf16.msra.mxu0 0
        %621 = vmatprep.subr.bf16.mxu0 0
        %622 = vmatpush1.bf16.msra.mxu0 0
        %623 = vmatprep.subr.bf16.mxu0 0
        %624 = vmatpush1.bf16.msra.mxu0 0
        %625 = vmatprep.subr.bf16.mxu0 0
        %626 = vmatpush1.bf16.msra.mxu0 0
        %627 = vmatprep.subr.bf16.mxu0 0
        %628 = vmatpush1.bf16.msra.mxu0 0
        %629 = vmatprep.subr.bf16.mxu0 0
        %630 = vmatpush1.bf16.msra.mxu0 0
        %631 = vmatprep.subr.bf16.mxu0 0
        %632 = vmatpush1.bf16.msra.mxu0 0
        %633 = vmatprep.subr.bf16.mxu0 0
        %634 = vmatpush1.bf16.msra.mxu0 0
        %635 = vmatprep.mubr.bf16.mxu0 0
        %636 = vmatmul.mubr.bf16.gmra.mrb[0].mxu0 %v597
        %v637 = vpop.f32.mrb[0].mxu0
        %v638 = vadd.f32 0.0, %v637
        %v639 = vpop.f32.mrb[0].mxu0
        %v640 = vpop.f32.mrb[0].mxu0
        %v641 = vpop.f32.mrb[0].mxu0
        %642 = vdwg.mxu0
        %v643 = vrcp.pop %v594
        %v644 = vmul.f32 %v638, %v643
        %645 = vst.msk [vmem:[#allocation3] sm:$0xff] %vm538, %v644
        %647 = vrot.lane.b32.xlu0 %v535, 124
        %v648 = vpop.permute.xlu0 %647
        %650 = vrot.lane.b32.xlu0 %v536, 124
        %v651 = vpop.permute.xlu0 %650
        %v653 = vsel %vm538, %v648, 0
        %v656 = vsel %vm538, %v651, 0
        %658 = vmatprep.subr.bf16.mxu0 0
        %659 = vmatpush1.bf16.xpose.msra.mxu0 %v656
        %660 = vmatprep.subr.bf16.mxu0 0
        %661 = vmatpush1.bf16.xpose.msra.mxu0 0
        %662 = vmatprep.subr.bf16.mxu0 0
        %663 = vmatpush1.bf16.xpose.msra.mxu0 0
        %664 = vmatprep.subr.bf16.mxu0 0
        %665 = vmatpush1.bf16.xpose.msra.mxu0 0
        %666 = vmatprep.subr.bf16.mxu0 0
        %667 = vmatpush1.bf16.xpose.msra.mxu0 0
        %668 = vmatprep.subr.bf16.mxu0 0
        %669 = vmatpush1.bf16.xpose.msra.mxu0 0
        %670 = vmatprep.subr.bf16.mxu0 0
        %671 = vmatpush1.bf16.xpose.msra.mxu0 0
        %672 = vmatprep.subr.bf16.mxu0 0
        %673 = vmatpush1.bf16.xpose.msra.mxu0 0
        %674 = vmatprep.subr.bf16.mxu0 0
        %675 = vmatpush1.bf16.xpose.msra.mxu0 0
        %676 = vmatprep.subr.bf16.mxu0 0
        %677 = vmatpush1.bf16.xpose.msra.mxu0 0
        %678 = vmatprep.subr.bf16.mxu0 0
        %679 = vmatpush1.bf16.xpose.msra.mxu0 0
        %680 = vmatprep.subr.bf16.mxu0 0
        %681 = vmatpush1.bf16.xpose.msra.mxu0 0
        %682 = vmatprep.subr.bf16.mxu0 0
        %683 = vmatpush1.bf16.xpose.msra.mxu0 0
        %684 = vmatprep.subr.bf16.mxu0 0
        %685 = vmatpush1.bf16.xpose.msra.mxu0 0
        %686 = vmatprep.subr.bf16.mxu0 0
        %687 = vmatpush1.bf16.xpose.msra.mxu0 0
        %688 = vmatprep.subr.bf16.mxu0 0
        %689 = vmatpush1.bf16.xpose.msra.mxu0 0
        %690 = vmatprep.mubr.bf16.mxu0 0
        %691 = vmatmul.mubr.bf16.gmra.mrb[0].mxu0 %v653
        %v692 = vpop.f32.mrb[0].mxu0
        %v693 = vadd.f32 0.0, %v692
        %v694 = vpop.f32.mrb[0].mxu0
        %v695 = vpop.f32.mrb[0].mxu0
        %v696 = vpop.f32.mrb[0].mxu0
        %697 = vdwg.mxu0
        %v698 = vsel %vm585, %v693, -inf
        %699 = vmax.xlane.f32.xlu0 %v698
        %v700 = vpop.xlane.xlu0 %699
        %v701 = vsub.f32 %v693, %v700
        %v702 = vmul.f32 %v701, 1.442695
        %v703 = vpow.pop %v702
        %v704 = vsel %vm585, %v703, 0.0
        %705 = vadd.xlane.f32.xlu0 %v704
        %v706 = vpop.xlane.xlu0 %705
        %v707 = vpack.c.bf16 %v703, %v703
        %709 = vrot.lane.b32.xlu0 %v537, 124
        %v710 = vpop.permute.xlu0 %709
        %v712 = vsel %vm585, %v707, 0
        %v715 = vsel %vm599, %v710, 0
        %717 = vmatprep.subr.bf16.mxu0 0
        %718 = vmatpush1.bf16.msra.mxu0 %v715
        %719 = vmatprep.subr.bf16.mxu0 0
        %720 = vmatpush1.bf16.msra.mxu0 0
        %721 = vmatprep.subr.bf16.mxu0 0
        %722 = vmatpush1.bf16.msra.mxu0 0
        %723 = vmatprep.subr.bf16.mxu0 0
        %724 = vmatpush1.bf16.msra.mxu0 0
        %725 = vmatprep.subr.bf16.mxu0 0
        %726 = vmatpush1.bf16.msra.mxu0 0
        %727 = vmatprep.subr.bf16.mxu0 0
        %728 = vmatpush1.bf16.msra.mxu0 0
        %729 = vmatprep.subr.bf16.mxu0 0
        %730 = vmatpush1.bf16.msra.mxu0 0
        %731 = vmatprep.subr.bf16.mxu0 0
        %732 = vmatpush1.bf16.msra.mxu0 0
        %733 = vmatprep.subr.bf16.mxu0 0
        %734 = vmatpush1.bf16.msra.mxu0 0
        %735 = vmatprep.subr.bf16.mxu0 0
        %736 = vmatpush1.bf16.msra.mxu0 0
        %737 = vmatprep.subr.bf16.mxu0 0
        %738 = vmatpush1.bf16.msra.mxu0 0
        %739 = vmatprep.subr.bf16.mxu0 0
        %740 = vmatpush1.bf16.msra.mxu0 0
        %741 = vmatprep.subr.bf16.mxu0 0
        %742 = vmatpush1.bf16.msra.mxu0 0
        %743 = vmatprep.subr.bf16.mxu0 0
        %744 = vmatpush1.bf16.msra.mxu0 0
        %745 = vmatprep.subr.bf16.mxu0 0
        %746 = vmatpush1.bf16.msra.mxu0 0
        %747 = vmatprep.subr.bf16.mxu0 0
        %748 = vmatpush1.bf16.msra.mxu0 0
        %749 = vmatprep.mubr.bf16.mxu0 0
        %750 = vmatmul.mubr.bf16.gmra.mrb[0].mxu0 %v712
        %v751 = vpop.f32.mrb[0].mxu0
        %v752 = vadd.f32 0.0, %v751
        %v753 = vpop.f32.mrb[0].mxu0
        %v754 = vpop.f32.mrb[0].mxu0
        %v755 = vpop.f32.mrb[0].mxu0
        %756 = vdwg.mxu0
        %v757 = vrcp.pop %v706
        %v758 = vmul.f32 %v752, %v757
        %760 = vrot.lane.b32.xlu0 %v758, 4
        %v761 = vpop.permute.xlu0 %760
        %vm763 = vcmask 64544
        %764 = vst.msk [vmem:[#allocation3] sm:$0xff] %vm763, %v761
        %765 = vrot.lane.b32.xlu0 %v535, 120
        %v766 = vpop.permute.xlu0 %765
        %767 = vrot.lane.b32.xlu0 %v536, 120
        %v768 = vpop.permute.xlu0 %767
        %v770 = vsel %vm538, %v766, 0
        %v773 = vsel %vm538, %v768, 0
        %775 = vmatprep.subr.bf16.mxu0 0
        %776 = vmatpush1.bf16.xpose.msra.mxu0 %v773
        %777 = vmatprep.subr.bf16.mxu0 0
        %778 = vmatpush1.bf16.xpose.msra.mxu0 0
        %779 = vmatprep.subr.bf16.mxu0 0
        %780 = vmatpush1.bf16.xpose.msra.mxu0 0
        %781 = vmatprep.subr.bf16.mxu0 0
        %782 = vmatpush1.bf16.xpose.msra.mxu0 0
        %783 = vmatprep.subr.bf16.mxu0 0
        %784 = vmatpush1.bf16.xpose.msra.mxu0 0
        %785 = vmatprep.subr.bf16.mxu0 0
        %786 = vmatpush1.bf16.xpose.msra.mxu0 0
        %787 = vmatprep.subr.bf16.mxu0 0
        %788 = vmatpush1.bf16.xpose.msra.mxu0 0
        %789 = vmatprep.subr.bf16.mxu0 0
        %790 = vmatpush1.bf16.xpose.msra.mxu0 0
        %791 = vmatprep.subr.bf16.mxu0 0
        %792 = vmatpush1.bf16.xpose.msra.mxu0 0
        %793 = vmatprep.subr.bf16.mxu0 0
        %794 = vmatpush1.bf16.xpose.msra.mxu0 0
        %795 = vmatprep.subr.bf16.mxu0 0
        %796 = vmatpush1.bf16.xpose.msra.mxu0 0
        %797 = vmatprep.subr.bf16.mxu0 0
        %798 = vmatpush1.bf16.xpose.msra.mxu0 0
        %799 = vmatprep.subr.bf16.mxu0 0
        %800 = vmatpush1.bf16.xpose.msra.mxu0 0
        %801 = vmatprep.subr.bf16.mxu0 0
        %802 = vmatpush1.bf16.xpose.msra.mxu0 0
        %803 = vmatprep.subr.bf16.mxu0 0
        %804 = vmatpush1.bf16.xpose.msra.mxu0 0
        %805 = vmatprep.subr.bf16.mxu0 0
        %806 = vmatpush1.bf16.xpose.msra.mxu0 0
        %807 = vmatprep.mubr.bf16.mxu0 0
        %808 = vmatmul.mubr.bf16.gmra.mrb[0].mxu0 %v770
        %v809 = vpop.f32.mrb[0].mxu0
        %v810 = vadd.f32 0.0, %v809
        %v811 = vpop.f32.mrb[0].mxu0
        %v812 = vpop.f32.mrb[0].mxu0
        %v813 = vpop.f32.mrb[0].mxu0
        %814 = vdwg.mxu0
        %v815 = vsel %vm585, %v810, -inf
        %816 = vmax.xlane.f32.xlu0 %v815
        %v817 = vpop.xlane.xlu0 %816
        %v818 = vsub.f32 %v810, %v817
        %v819 = vmul.f32 %v818, 1.442695
        %v820 = vpow.pop %v819
        %v821 = vsel %vm585, %v820, 0.0
        %822 = vadd.xlane.f32.xlu0 %v821
        %v823 = vpop.xlane.xlu0 %822
        %v824 = vpack.c.bf16 %v820, %v820
        %825 = vrot.lane.b32.xlu0 %v537, 120
        %v826 = vpop.permute.xlu0 %825
        %v828 = vsel %vm585, %v824, 0
        %v831 = vsel %vm599, %v826, 0
        %833 = vmatprep.subr.bf16.mxu0 0
        %834 = vmatpush1.bf16.msra.mxu0 %v831
        %835 = vmatprep.subr.bf16.mxu0 0
        %836 = vmatpush1.bf16.msra.mxu0 0
        %837 = vmatprep.subr.bf16.mxu0 0
        %838 = vmatpush1.bf16.msra.mxu0 0
        %839 = vmatprep.subr.bf16.mxu0 0
        %840 = vmatpush1.bf16.msra.mxu0 0
        %841 = vmatprep.subr.bf16.mxu0 0
        %842 = vmatpush1.bf16.msra.mxu0 0
        %843 = vmatprep.subr.bf16.mxu0 0
        %844 = vmatpush1.bf16.msra.mxu0 0
        %845 = vmatprep.subr.bf16.mxu0 0
        %846 = vmatpush1.bf16.msra.mxu0 0
        %847 = vmatprep.subr.bf16.mxu0 0
        %848 = vmatpush1.bf16.msra.mxu0 0
        %849 = vmatprep.subr.bf16.mxu0 0
        %850 = vmatpush1.bf16.msra.mxu0 0
        %851 = vmatprep.subr.bf16.mxu0 0
        %852 = vmatpush1.bf16.msra.mxu0 0
        %853 = vmatprep.subr.bf16.mxu0 0
        %854 = vmatpush1.bf16.msra.mxu0 0
        %855 = vmatprep.subr.bf16.mxu0 0
        %856 = vmatpush1.bf16.msra.mxu0 0
        %857 = vmatprep.subr.bf16.mxu0 0
        %858 = vmatpush1.bf16.msra.mxu0 0
        %859 = vmatprep.subr.bf16.mxu0 0
        %860 = vmatpush1.bf16.msra.mxu0 0
        %861 = vmatprep.subr.bf16.mxu0 0
        %862 = vmatpush1.bf16.msra.mxu0 0
        %863 = vmatprep.subr.bf16.mxu0 0
        %864 = vmatpush1.bf16.msra.mxu0 0
        %865 = vmatprep.mubr.bf16.mxu0 0
        %866 = vmatmul.mubr.bf16.gmra.mrb[0].mxu0 %v828
        %v867 = vpop.f32.mrb[0].mxu0
        %v868 = vadd.f32 0.0, %v867
        %v869 = vpop.f32.mrb[0].mxu0
        %v870 = vpop.f32.mrb[0].mxu0
        %v871 = vpop.f32.mrb[0].mxu0
        %872 = vdwg.mxu0
        %v873 = vrcp.pop %v823
        %v874 = vmul.f32 %v868, %v873
        %876 = vrot.lane.b32.xlu0 %v874, 8
        %v877 = vpop.permute.xlu0 %876
        %vm879 = vcmask 97344
        %880 = vst.msk [vmem:[#allocation3] sm:$0xff] %vm879, %v877
        %881 = vrot.lane.b32.xlu0 %v535, 116
        %v882 = vpop.permute.xlu0 %881
        %883 = vrot.lane.b32.xlu0 %v536, 116
        %v884 = vpop.permute.xlu0 %883
        %v886 = vsel %vm538, %v882, 0
        %v889 = vsel %vm538, %v884, 0
        %891 = vmatprep.subr.bf16.mxu0 0
        %892 = vmatpush1.bf16.xpose.msra.mxu0 %v889
        %893 = vmatprep.subr.bf16.mxu0 0
        %894 = vmatpush1.bf16.xpose.msra.mxu0 0
        %895 = vmatprep.subr.bf16.mxu0 0
        %896 = vmatpush1.bf16.xpose.msra.mxu0 0
        %897 = vmatprep.subr.bf16.mxu0 0
        %898 = vmatpush1.bf16.xpose.msra.mxu0 0
        %899 = vmatprep.subr.bf16.mxu0 0
        %900 = vmatpush1.bf16.xpose.msra.mxu0 0
        %901 = vmatprep.subr.bf16.mxu0 0
        %902 = vmatpush1.bf16.xpose.msra.mxu0 0
        %903 = vmatprep.subr.bf16.mxu0 0
        %904 = vmatpush1.bf16.xpose.msra.mxu0 0
        %905 = vmatprep.subr.bf16.mxu0 0
        %906 = vmatpush1.bf16.xpose.msra.mxu0 0
        %907 = vmatprep.subr.bf16.mxu0 0
        %908 = vmatpush1.bf16.xpose.msra.mxu0 0
        %909 = vmatprep.subr.bf16.mxu0 0
        %910 = vmatpush1.bf16.xpose.msra.mxu0 0
        %911 = vmatprep.subr.bf16.mxu0 0
        %912 = vmatpush1.bf16.xpose.msra.mxu0 0
        %913 = vmatprep.subr.bf16.mxu0 0
        %914 = vmatpush1.bf16.xpose.msra.mxu0 0
        %915 = vmatprep.subr.bf16.mxu0 0
        %916 = vmatpush1.bf16.xpose.msra.mxu0 0
        %917 = vmatprep.subr.bf16.mxu0 0
        %918 = vmatpush1.bf16.xpose.msra.mxu0 0
        %919 = vmatprep.subr.bf16.mxu0 0
        %920 = vmatpush1.bf16.xpose.msra.mxu0 0
        %921 = vmatprep.subr.bf16.mxu0 0
        %922 = vmatpush1.bf16.xpose.msra.mxu0 0
        %923 = vmatprep.mubr.bf16.mxu0 0
        %924 = vmatmul.mubr.bf16.gmra.mrb[0].mxu0 %v886
        %v925 = vpop.f32.mrb[0].mxu0
        %v926 = vadd.f32 0.0, %v925
        %v927 = vpop.f32.mrb[0].mxu0
        %v928 = vpop.f32.mrb[0].mxu0
        %v929 = vpop.f32.mrb[0].mxu0
        %930 = vdwg.mxu0
        %v931 = vsel %vm585, %v926, -inf
        %932 = vmax.xlane.f32.xlu0 %v931
        %v933 = vpop.xlane.xlu0 %932
        %v934 = vsub.f32 %v926, %v933
        %v935 = vmul.f32 %v934, 1.442695
        %v936 = vpow.pop %v935
        %v937 = vsel %vm585, %v936, 0.0
        %938 = vadd.xlane.f32.xlu0 %v937
        %v939 = vpop.xlane.xlu0 %938
        %v940 = vpack.c.bf16 %v936, %v936
        %941 = vrot.lane.b32.xlu0 %v537, 116
        %v942 = vpop.permute.xlu0 %941
        %v944 = vsel %vm585, %v940, 0
        %v947 = vsel %vm599, %v942, 0
        %949 = vmatprep.subr.bf16.mxu0 0
        %950 = vmatpush1.bf16.msra.mxu0 %v947
        %951 = vmatprep.subr.bf16.mxu0 0
        %952 = vmatpush1.bf16.msra.mxu0 0
        %953 = vmatprep.subr.bf16.mxu0 0
        %954 = vmatpush1.bf16.msra.mxu0 0
        %955 = vmatprep.subr.bf16.mxu0 0
        %956 = vmatpush1.bf16.msra.mxu0 0
        %957 = vmatprep.subr.bf16.mxu0 0
        %958 = vmatpush1.bf16.msra.mxu0 0
        %959 = vmatprep.subr.bf16.mxu0 0
        %960 = vmatpush1.bf16.msra.mxu0 0
        %961 = vmatprep.subr.bf16.mxu0 0
        %962 = vmatpush1.bf16.msra.mxu0 0
        %963 = vmatprep.subr.bf16.mxu0 0
        %964 = vmatpush1.bf16.msra.mxu0 0
        %965 = vmatprep.subr.bf16.mxu0 0
        %966 = vmatpush1.bf16.msra.mxu0 0
        %967 = vmatprep.subr.bf16.mxu0 0
        %968 = vmatpush1.bf16.msra.mxu0 0
        %969 = vmatprep.subr.bf16.mxu0 0
        %970 = vmatpush1.bf16.msra.mxu0 0
        %971 = vmatprep.subr.bf16.mxu0 0
        %972 = vmatpush1.bf16.msra.mxu0 0
        %973 = vmatprep.subr.bf16.mxu0 0
        %974 = vmatpush1.bf16.msra.mxu0 0
        %975 = vmatprep.subr.bf16.mxu0 0
        %976 = vmatpush1.bf16.msra.mxu0 0
        %977 = vmatprep.subr.bf16.mxu0 0
        %978 = vmatpush1.bf16.msra.mxu0 0
        %979 = vmatprep.subr.bf16.mxu0 0
        %980 = vmatpush1.bf16.msra.mxu0 0
        %981 = vmatprep.mubr.bf16.mxu0 0
        %982 = vmatmul.mubr.bf16.gmra.mrb[0].mxu0 %v944
        %v983 = vpop.f32.mrb[0].mxu0
        %v984 = vadd.f32 0.0, %v983
        %v985 = vpop.f32.mrb[0].mxu0
        %v986 = vpop.f32.mrb[0].mxu0
        %v987 = vpop.f32.mrb[0].mxu0
        %988 = vdwg.mxu0
        %v989 = vrcp.pop %v939
        %v990 = vmul.f32 %v984, %v989
        %992 = vrot.lane.b32.xlu0 %v990, 12
        %v993 = vpop.permute.xlu0 %992
        %vm995 = vcmask 130144
        %996 = vst.msk [vmem:[#allocation3] sm:$0xff] %vm995, %v993
        %997 = vrot.lane.b32.xlu0 %v535, 112
        %v998 = vpop.permute.xlu0 %997
        %999 = vrot.lane.b32.xlu0 %v536, 112
        %v1000 = vpop.permute.xlu0 %999
        %v1002 = vsel %vm538, %v998, 0
        %v1005 = vsel %vm538, %v1000, 0
        %1007 = vmatprep.subr.bf16.mxu0 0
        %1008 = vmatpush1.bf16.xpose.msra.mxu0 %v1005
        %1009 = vmatprep.subr.bf16.mxu0 0
        %1010 = vmatpush1.bf16.xpose.msra.mxu0 0
        %1011 = vmatprep.subr.bf16.mxu0 0
        %1012 = vmatpush1.bf16.xpose.msra.mxu0 0
        %1013 = vmatprep.subr.bf16.mxu0 0
        %1014 = vmatpush1.bf16.xpose.msra.mxu0 0
        %1015 = vmatprep.subr.bf16.mxu0 0
        %1016 = vmatpush1.bf16.xpose.msra.mxu0 0
        %1017 = vmatprep.subr.bf16.mxu0 0
        %1018 = vmatpush1.bf16.xpose.msra.mxu0 0
        %1019 = vmatprep.subr.bf16.mxu0 0
        %1020 = vmatpush1.bf16.xpose.msra.mxu0 0
        %1021 = vmatprep.subr.bf16.mxu0 0
        %1022 = vmatpush1.bf16.xpose.msra.mxu0 0
        %1023 = vmatprep.subr.bf16.mxu0 0
        %1024 = vmatpush1.bf16.xpose.msra.mxu0 0
        %1025 = vmatprep.subr.bf16.mxu0 0
        %1026 = vmatpush1.bf16.xpose.msra.mxu0 0
        %1027 = vmatprep.subr.bf16.mxu0 0
        %1028 = vmatpush1.bf16.xpose.msra.mxu0 0
        %1029 = vmatprep.subr.bf16.mxu0 0
        %1030 = vmatpush1.bf16.xpose.msra.mxu0 0
        %1031 = vmatprep.subr.bf16.mxu0 0
        %1032 = vmatpush1.bf16.xpose.msra.mxu0 0
        %1033 = vmatprep.subr.bf16.mxu0 0
        %1034 = vmatpush1.bf16.xpose.msra.mxu0 0
        %1035 = vmatprep.subr.bf16.mxu0 0
        %1036 = vmatpush1.bf16.xpose.msra.mxu0 0
        %1037 = vmatprep.subr.bf16.mxu0 0
        %1038 = vmatpush1.bf16.xpose.msra.mxu0 0
        %1039 = vmatprep.mubr.bf16.mxu0 0
        %1040 = vmatmul.mubr.bf16.gmra.mrb[0].mxu0 %v1002
        %v1041 = vpop.f32.mrb[0].mxu0
        %v1042 = vadd.f32 0.0, %v1041
        %v1043 = vpop.f32.mrb[0].mxu0
        %v1044 = vpop.f32.mrb[0].mxu0
        %v1045 = vpop.f32.mrb[0].mxu0
        %1046 = vdwg.mxu0
        %v1047 = vsel %vm585, %v1042, -inf
        %1048 = vmax.xlane.f32.xlu0 %v1047
        %v1049 = vpop.xlane.xlu0 %1048
        %v1050 = vsub.f32 %v1042, %v1049
        %v1051 = vmul.f32 %v1050, 1.442695
        %v1052 = vpow.pop %v1051
        %v1053 = vsel %vm585, %v1052, 0.0
        %1054 = vadd.xlane.f32.xlu0 %v1053
        %v1055 = vpop.xlane.xlu0 %1054
        %v1056 = vpack.c.bf16 %v1052, %v1052
        %1057 = vrot.lane.b32.xlu0 %v537, 112
        %v1058 = vpop.permute.xlu0 %1057
        %v1060 = vsel %vm585, %v1056, 0
        %v1063 = vsel %vm599, %v1058, 0
        %1065 = vmatprep.subr.bf16.mxu0 0
        %1066 = vmatpush1.bf16.msra.mxu0 %v1063
        %1067 = vmatprep.subr.bf16.mxu0 0
        %1068 = vmatpush1.bf16.msra.mxu0 0
        %1069 = vmatprep.subr.bf16.mxu0 0
        %1070 = vmatpush1.bf16.msra.mxu0 0
        %1071 = vmatprep.subr.bf16.mxu0 0
        %1072 = vmatpush1.bf16.msra.mxu0 0
        %1073 = vmatprep.subr.bf16.mxu0 0
        %1074 = vmatpush1.bf16.msra.mxu0 0
        %1075 = vmatprep.subr.bf16.mxu0 0
        %1076 = vmatpush1.bf16.msra.mxu0 0
        %1077 = vmatprep.subr.bf16.mxu0 0
        %1078 = vmatpush1.bf16.msra.mxu0 0
        %1079 = vmatprep.subr.bf16.mxu0 0
        %1080 = vmatpush1.bf16.msra.mxu0 0
        %1081 = vmatprep.subr.bf16.mxu0 0
        %1082 = vmatpush1.bf16.msra.mxu0 0
        %1083 = vmatprep.subr.bf16.mxu0 0
        %1084 = vmatpush1.bf16.msra.mxu0 0
        %1085 = vmatprep.subr.bf16.mxu0 0
        %1086 = vmatpush1.bf16.msra.mxu0 0
        %1087 = vmatprep.subr.bf16.mxu0 0
        %1088 = vmatpush1.bf16.msra.mxu0 0
        %1089 = vmatprep.subr.bf16.mxu0 0
        %1090 = vmatpush1.bf16.msra.mxu0 0
        %1091 = vmatprep.subr.bf16.mxu0 0
        %1092 = vmatpush1.bf16.msra.mxu0 0
        %1093 = vmatprep.subr.bf16.mxu0 0
        %1094 = vmatpush1.bf16.msra.mxu0 0
        %1095 = vmatprep.subr.bf16.mxu0 0
        %1096 = vmatpush1.bf16.msra.mxu0 0
        %1097 = vmatprep.mubr.bf16.mxu0 0
        %1098 = vmatmul.mubr.bf16.gmra.mrb[0].mxu0 %v1060
        %v1099 = vpop.f32.mrb[0].mxu0
        %v1100 = vadd.f32 0.0, %v1099
        %v1101 = vpop.f32.mrb[0].mxu0
        %v1102 = vpop.f32.mrb[0].mxu0
        %v1103 = vpop.f32.mrb[0].mxu0
        %1104 = vdwg.mxu0
        %v1105 = vrcp.pop %v1055
        %v1106 = vmul.f32 %v1100, %v1105
        %1108 = vrot.lane.b32.xlu0 %v1106, 16
        %v1109 = vpop.permute.xlu0 %1108
        %vm1111 = vcmask 162944
        %1112 = vst.msk [vmem:[#allocation3] sm:$0xff] %vm1111, %v1109
        %1113 = vrot.lane.b32.xlu0 %v535, 108
        %v1114 = vpop.permute.xlu0 %1113
        %1115 = vrot.lane.b32.xlu0 %v536, 108
        %v1116 = vpop.permute.xlu0 %1115
        %v1118 = vsel %vm538, %v1114, 0
        %v1121 = vsel %vm538, %v1116, 0
        %1123 = vmatprep.subr.bf16.mxu0 0
        %1124 = vmatpush1.bf16.xpose.msra.mxu0 %v1121
        %1125 = vmatprep.subr.bf16.mxu0 0
        %1126 = vmatpush1.bf16.xpose.msra.mxu0 0
        %1127 = vmatprep.subr.bf16.mxu0 0
        %1128 = vmatpush1.bf16.xpose.msra.mxu0 0
        %1129 = vmatprep.subr.bf16.mxu0 0
        %1130 = vmatpush1.bf16.xpose.msra.mxu0 0
        %1131 = vmatprep.subr.bf16.mxu0 0
        %1132 = vmatpush1.bf16.xpose.msra.mxu0 0
        %1133 = vmatprep.subr.bf16.mxu0 0
        %1134 = vmatpush1.bf16.xpose.msra.mxu0 0
        %1135 = vmatprep.subr.bf16.mxu0 0
        %1136 = vmatpush1.bf16.xpose.msra.mxu0 0
        %1137 = vmatprep.subr.bf16.mxu0 0
        %1138 = vmatpush1.bf16.xpose.msra.mxu0 0
        %1139 = vmatprep.subr.bf16.mxu0 0
        %1140 = vmatpush1.bf16.xpose.msra.mxu0 0
        %1141 = vmatprep.subr.bf16.mxu0 0
        %1142 = vmatpush1.bf16.xpose.msra.mxu0 0
        %1143 = vmatprep.subr.bf16.mxu0 0
        %1144 = vmatpush1.bf16.xpose.msra.mxu0 0
        %1145 = vmatprep.subr.bf16.mxu0 0
        %1146 = vmatpush1.bf16.xpose.msra.mxu0 0
        %1147 = vmatprep.subr.bf16.mxu0 0
        %1148 = vmatpush1.bf16.xpose.msra.mxu0 0
        %1149 = vmatprep.subr.bf16.mxu0 0
        %1150 = vmatpush1.bf16.xpose.msra.mxu0 0
        %1151 = vmatprep.subr.bf16.mxu0 0
        %1152 = vmatpush1.bf16.xpose.msra.mxu0 0
        %1153 = vmatprep.subr.bf16.mxu0 0
        %1154 = vmatpush1.bf16.xpose.msra.mxu0 0
        %1155 = vmatprep.mubr.bf16.mxu0 0
        %1156 = vmatmul.mubr.bf16.gmra.mrb[0].mxu0 %v1118
        %v1157 = vpop.f32.mrb[0].mxu0
        %v1158 = vadd.f32 0.0, %v1157
        %v1159 = vpop.f32.mrb[0].mxu0
        %v1160 = vpop.f32.mrb[0].mxu0
        %v1161 = vpop.f32.mrb[0].mxu0
        %1162 = vdwg.mxu0
        %v1163 = vsel %vm585, %v1158, -inf
        %1164 = vmax.xlane.f32.xlu0 %v1163
        %v1165 = vpop.xlane.xlu0 %1164
        %v1166 = vsub.f32 %v1158, %v1165
        %v1167 = vmul.f32 %v1166, 1.442695
        %v1168 = vpow.pop %v1167
        %v1169 = vsel %vm585, %v1168, 0.0
        %1170 = vadd.xlane.f32.xlu0 %v1169
        %v1171 = vpop.xlane.xlu0 %1170
        %v1172 = vpack.c.bf16 %v1168, %v1168
        %1173 = vrot.lane.b32.xlu0 %v537, 108
        %v1174 = vpop.permute.xlu0 %1173
        %v1176 = vsel %vm585, %v1172, 0
        %v1179 = vsel %vm599, %v1174, 0
        %1181 = vmatprep.subr.bf16.mxu0 0
        %1182 = vmatpush1.bf16.msra.mxu0 %v1179
        %1183 = vmatprep.subr.bf16.mxu0 0
        %1184 = vmatpush1.bf16.msra.mxu0 0
        %1185 = vmatprep.subr.bf16.mxu0 0
        %1186 = vmatpush1.bf16.msra.mxu0 0
        %1187 = vmatprep.subr.bf16.mxu0 0
        %1188 = vmatpush1.bf16.msra.mxu0 0
        %1189 = vmatprep.subr.bf16.mxu0 0
        %1190 = vmatpush1.bf16.msra.mxu0 0
        %1191 = vmatprep.subr.bf16.mxu0 0
        %1192 = vmatpush1.bf16.msra.mxu0 0
        %1193 = vmatprep.subr.bf16.mxu0 0
        %1194 = vmatpush1.bf16.msra.mxu0 0
        %1195 = vmatprep.subr.bf16.mxu0 0
        %1196 = vmatpush1.bf16.msra.mxu0 0
        %1197 = vmatprep.subr.bf16.mxu0 0
        %1198 = vmatpush1.bf16.msra.mxu0 0
        %1199 = vmatprep.subr.bf16.mxu0 0
        %1200 = vmatpush1.bf16.msra.mxu0 0
        %1201 = vmatprep.subr.bf16.mxu0 0
        %1202 = vmatpush1.bf16.msra.mxu0 0
        %1203 = vmatprep.subr.bf16.mxu0 0
        %1204 = vmatpush1.bf16.msra.mxu0 0
        %1205 = vmatprep.subr.bf16.mxu0 0
        %1206 = vmatpush1.bf16.msra.mxu0 0
        %1207 = vmatprep.subr.bf16.mxu0 0
        %1208 = vmatpush1.bf16.msra.mxu0 0
        %1209 = vmatprep.subr.bf16.mxu0 0
        %1210 = vmatpush1.bf16.msra.mxu0 0
        %1211 = vmatprep.subr.bf16.mxu0 0
        %1212 = vmatpush1.bf16.msra.mxu0 0
        %1213 = vmatprep.mubr.bf16.mxu0 0
        %1214 = vmatmul.mubr.bf16.gmra.mrb[0].mxu0 %v1176
        %v1215 = vpop.f32.mrb[0].mxu0
        %v1216 = vadd.f32 0.0, %v1215
        %v1217 = vpop.f32.mrb[0].mxu0
        %v1218 = vpop.f32.mrb[0].mxu0
        %v1219 = vpop.f32.mrb[0].mxu0
        %1220 = vdwg.mxu0
        %v1221 = vrcp.pop %v1171
        %v1222 = vmul.f32 %v1216, %v1221
        %1224 = vrot.lane.b32.xlu0 %v1222, 20
        %v1225 = vpop.permute.xlu0 %1224
        %vm1227 = vcmask 195744
        %1228 = vst.msk [vmem:[#allocation3] sm:$0xff] %vm1227, %v1225
        %1229 = vrot.lane.b32.xlu0 %v535, 104
        %v1230 = vpop.permute.xlu0 %1229
        %1231 = vrot.lane.b32.xlu0 %v536, 104
        %v1232 = vpop.permute.xlu0 %1231
        %v1234 = vsel %vm538, %v1230, 0
        %v1237 = vsel %vm538, %v1232, 0
        %1239 = vmatprep.subr.bf16.mxu0 0
        %1240 = vmatpush1.bf16.xpose.msra.mxu0 %v1237
        %1241 = vmatprep.subr.bf16.mxu0 0
        %1242 = vmatpush1.bf16.xpose.msra.mxu0 0
        %1243 = vmatprep.subr.bf16.mxu0 0
        %1244 = vmatpush1.bf16.xpose.msra.mxu0 0
        %1245 = vmatprep.subr.bf16.mxu0 0
        %1246 = vmatpush1.bf16.xpose.msra.mxu0 0
        %1247 = vmatprep.subr.bf16.mxu0 0
        %1248 = vmatpush1.bf16.xpose.msra.mxu0 0
        %1249 = vmatprep.subr.bf16.mxu0 0
        %1250 = vmatpush1.bf16.xpose.msra.mxu0 0
        %1251 = vmatprep.subr.bf16.mxu0 0
        %1252 = vmatpush1.bf16.xpose.msra.mxu0 0
        %1253 = vmatprep.subr.bf16.mxu0 0
        %1254 = vmatpush1.bf16.xpose.msra.mxu0 0
        %1255 = vmatprep.subr.bf16.mxu0 0
        %1256 = vmatpush1.bf16.xpose.msra.mxu0 0
        %1257 = vmatprep.subr.bf16.mxu0 0
        %1258 = vmatpush1.bf16.xpose.msra.mxu0 0
        %1259 = vmatprep.subr.bf16.mxu0 0
        %1260 = vmatpush1.bf16.xpose.msra.mxu0 0
        %1261 = vmatprep.subr.bf16.mxu0 0
        %1262 = vmatpush1.bf16.xpose.msra.mxu0 0
        %1263 = vmatprep.subr.bf16.mxu0 0
        %1264 = vmatpush1.bf16.xpose.msra.mxu0 0
        %1265 = vmatprep.subr.bf16.mxu0 0
        %1266 = vmatpush1.bf16.xpose.msra.mxu0 0
        %1267 = vmatprep.subr.bf16.mxu0 0
        %1268 = vmatpush1.bf16.xpose.msra.mxu0 0
        %1269 = vmatprep.subr.bf16.mxu0 0
        %1270 = vmatpush1.bf16.xpose.msra.mxu0 0
        %1271 = vmatprep.mubr.bf16.mxu0 0
        %1272 = vmatmul.mubr.bf16.gmra.mrb[0].mxu0 %v1234
        %v1273 = vpop.f32.mrb[0].mxu0
        %v1274 = vadd.f32 0.0, %v1273
        %v1275 = vpop.f32.mrb[0].mxu0
        %v1276 = vpop.f32.mrb[0].mxu0
        %v1277 = vpop.f32.mrb[0].mxu0
        %1278 = vdwg.mxu0
        %v1279 = vsel %vm585, %v1274, -inf
        %1280 = vmax.xlane.f32.xlu0 %v1279
        %v1281 = vpop.xlane.xlu0 %1280
        %v1282 = vsub.f32 %v1274, %v1281
        %v1283 = vmul.f32 %v1282, 1.442695
        %v1284 = vpow.pop %v1283
        %v1285 = vsel %vm585, %v1284, 0.0
        %1286 = vadd.xlane.f32.xlu0 %v1285
        %v1287 = vpop.xlane.xlu0 %1286
        %v1288 = vpack.c.bf16 %v1284, %v1284
        %1289 = vrot.lane.b32.xlu0 %v537, 104
        %v1290 = vpop.permute.xlu0 %1289
        %v1292 = vsel %vm585, %v1288, 0
        %v1295 = vsel %vm599, %v1290, 0
        %1297 = vmatprep.subr.bf16.mxu0 0
        %1298 = vmatpush1.bf16.msra.mxu0 %v1295
        %1299 = vmatprep.subr.bf16.mxu0 0
        %1300 = vmatpush1.bf16.msra.mxu0 0
        %1301 = vmatprep.subr.bf16.mxu0 0
        %1302 = vmatpush1.bf16.msra.mxu0 0
        %1303 = vmatprep.subr.bf16.mxu0 0
        %1304 = vmatpush1.bf16.msra.mxu0 0
        %1305 = vmatprep.subr.bf16.mxu0 0
        %1306 = vmatpush1.bf16.msra.mxu0 0
        %1307 = vmatprep.subr.bf16.mxu0 0
        %1308 = vmatpush1.bf16.msra.mxu0 0
        %1309 = vmatprep.subr.bf16.mxu0 0
        %1310 = vmatpush1.bf16.msra.mxu0 0
        %1311 = vmatprep.subr.bf16.mxu0 0
        %1312 = vmatpush1.bf16.msra.mxu0 0
        %1313 = vmatprep.subr.bf16.mxu0 0
        %1314 = vmatpush1.bf16.msra.mxu0 0
        %1315 = vmatprep.subr.bf16.mxu0 0
        %1316 = vmatpush1.bf16.msra.mxu0 0
        %1317 = vmatprep.subr.bf16.mxu0 0
        %1318 = vmatpush1.bf16.msra.mxu0 0
        %1319 = vmatprep.subr.bf16.mxu0 0
        %1320 = vmatpush1.bf16.msra.mxu0 0
        %1321 = vmatprep.subr.bf16.mxu0 0
        %1322 = vmatpush1.bf16.msra.mxu0 0
        %1323 = vmatprep.subr.bf16.mxu0 0
        %1324 = vmatpush1.bf16.msra.mxu0 0
        %1325 = vmatprep.subr.bf16.mxu0 0
        %1326 = vmatpush1.bf16.msra.mxu0 0
        %1327 = vmatprep.subr.bf16.mxu0 0
        %1328 = vmatpush1.bf16.msra.mxu0 0
        %1329 = vmatprep.mubr.bf16.mxu0 0
        %1330 = vmatmul.mubr.bf16.gmra.mrb[0].mxu0 %v1292
        %v1331 = vpop.f32.mrb[0].mxu0
        %v1332 = vadd.f32 0.0, %v1331
        %v1333 = vpop.f32.mrb[0].mxu0
        %v1334 = vpop.f32.mrb[0].mxu0
        %v1335 = vpop.f32.mrb[0].mxu0
        %1336 = vdwg.mxu0
        %v1337 = vrcp.pop %v1287
        %v1338 = vmul.f32 %v1332, %v1337
        %1340 = vrot.lane.b32.xlu0 %v1338, 24
        %v1341 = vpop.permute.xlu0 %1340
        %vm1343 = vcmask 228544
        %1344 = vst.msk [vmem:[#allocation3] sm:$0xff] %vm1343, %v1341
        %1345 = vrot.lane.b32.xlu0 %v535, 100
        %v1346 = vpop.permute.xlu0 %1345
        %1347 = vrot.lane.b32.xlu0 %v536, 100
        %v1348 = vpop.permute.xlu0 %1347
        %v1350 = vsel %vm538, %v1346, 0
        %v1353 = vsel %vm538, %v1348, 0
        %1355 = vmatprep.subr.bf16.mxu0 0
        %1356 = vmatpush1.bf16.xpose.msra.mxu0 %v1353
        %1357 = vmatprep.subr.bf16.mxu0 0
        %1358 = vmatpush1.bf16.xpose.msra.mxu0 0
        %1359 = vmatprep.subr.bf16.mxu0 0
        %1360 = vmatpush1.bf16.xpose.msra.mxu0 0
        %1361 = vmatprep.subr.bf16.mxu0 0
        %1362 = vmatpush1.bf16.xpose.msra.mxu0 0
        %1363 = vmatprep.subr.bf16.mxu0 0
        %1364 = vmatpush1.bf16.xpose.msra.mxu0 0
        %1365 = vmatprep.subr.bf16.mxu0 0
        %1366 = vmatpush1.bf16.xpose.msra.mxu0 0
        %1367 = vmatprep.subr.bf16.mxu0 0
        %1368 = vmatpush1.bf16.xpose.msra.mxu0 0
        %1369 = vmatprep.subr.bf16.mxu0 0
        %1370 = vmatpush1.bf16.xpose.msra.mxu0 0
        %1371 = vmatprep.subr.bf16.mxu0 0
        %1372 = vmatpush1.bf16.xpose.msra.mxu0 0
        %1373 = vmatprep.subr.bf16.mxu0 0
        %1374 = vmatpush1.bf16.xpose.msra.mxu0 0
        %1375 = vmatprep.subr.bf16.mxu0 0
        %1376 = vmatpush1.bf16.xpose.msra.mxu0 0
        %1377 = vmatprep.subr.bf16.mxu0 0
        %1378 = vmatpush1.bf16.xpose.msra.mxu0 0
        %1379 = vmatprep.subr.bf16.mxu0 0
        %1380 = vmatpush1.bf16.xpose.msra.mxu0 0
        %1381 = vmatprep.subr.bf16.mxu0 0
        %1382 = vmatpush1.bf16.xpose.msra.mxu0 0
        %1383 = vmatprep.subr.bf16.mxu0 0
        %1384 = vmatpush1.bf16.xpose.msra.mxu0 0
        %1385 = vmatprep.subr.bf16.mxu0 0
        %1386 = vmatpush1.bf16.xpose.msra.mxu0 0
        %1387 = vmatprep.mubr.bf16.mxu0 0
        %1388 = vmatmul.mubr.bf16.gmra.mrb[0].mxu0 %v1350
        %v1389 = vpop.f32.mrb[0].mxu0
        %v1390 = vadd.f32 0.0, %v1389
        %v1391 = vpop.f32.mrb[0].mxu0
        %v1392 = vpop.f32.mrb[0].mxu0
        %v1393 = vpop.f32.mrb[0].mxu0
        %1394 = vdwg.mxu0
        %v1395 = vsel %vm585, %v1390, -inf
        %1396 = vmax.xlane.f32.xlu0 %v1395
        %v1397 = vpop.xlane.xlu0 %1396
        %v1398 = vsub.f32 %v1390, %v1397
        %v1399 = vmul.f32 %v1398, 1.442695
        %v1400 = vpow.pop %v1399
        %v1401 = vsel %vm585, %v1400, 0.0
        %1402 = vadd.xlane.f32.xlu0 %v1401
        %v1403 = vpop.xlane.xlu0 %1402
        %v1404 = vpack.c.bf16 %v1400, %v1400
        %1405 = vrot.lane.b32.xlu0 %v537, 100
        %v1406 = vpop.permute.xlu0 %1405
        %v1408 = vsel %vm585, %v1404, 0
        %v1411 = vsel %vm599, %v1406, 0
        %1413 = vmatprep.subr.bf16.mxu0 0
        %1414 = vmatpush1.bf16.msra.mxu0 %v1411
        %1415 = vmatprep.subr.bf16.mxu0 0
        %1416 = vmatpush1.bf16.msra.mxu0 0
        %1417 = vmatprep.subr.bf16.mxu0 0
        %1418 = vmatpush1.bf16.msra.mxu0 0
        %1419 = vmatprep.subr.bf16.mxu0 0
        %1420 = vmatpush1.bf16.msra.mxu0 0
        %1421 = vmatprep.subr.bf16.mxu0 0
        %1422 = vmatpush1.bf16.msra.mxu0 0
        %1423 = vmatprep.subr.bf16.mxu0 0
        %1424 = vmatpush1.bf16.msra.mxu0 0
        %1425 = vmatprep.subr.bf16.mxu0 0
        %1426 = vmatpush1.bf16.msra.mxu0 0
        %1427 = vmatprep.subr.bf16.mxu0 0
        %1428 = vmatpush1.bf16.msra.mxu0 0
        %1429 = vmatprep.subr.bf16.mxu0 0
        %1430 = vmatpush1.bf16.msra.mxu0 0
        %1431 = vmatprep.subr.bf16.mxu0 0
        %1432 = vmatpush1.bf16.msra.mxu0 0
        %1433 = vmatprep.subr.bf16.mxu0 0
        %1434 = vmatpush1.bf16.msra.mxu0 0
        %1435 = vmatprep.subr.bf16.mxu0 0
        %1436 = vmatpush1.bf16.msra.mxu0 0
        %1437 = vmatprep.subr.bf16.mxu0 0
        %1438 = vmatpush1.bf16.msra.mxu0 0
        %1439 = vmatprep.subr.bf16.mxu0 0
        %1440 = vmatpush1.bf16.msra.mxu0 0
        %1441 = vmatprep.subr.bf16.mxu0 0
        %1442 = vmatpush1.bf16.msra.mxu0 0
        %1443 = vmatprep.subr.bf16.mxu0 0
        %1444 = vmatpush1.bf16.msra.mxu0 0
        %1445 = vmatprep.mubr.bf16.mxu0 0
        %1446 = vmatmul.mubr.bf16.gmra.mrb[0].mxu0 %v1408
        %v1447 = vpop.f32.mrb[0].mxu0
        %v1448 = vadd.f32 0.0, %v1447
        %v1449 = vpop.f32.mrb[0].mxu0
        %v1450 = vpop.f32.mrb[0].mxu0
        %v1451 = vpop.f32.mrb[0].mxu0
        %1452 = vdwg.mxu0
        %v1453 = vrcp.pop %v1403
        %v1454 = vmul.f32 %v1448, %v1453
        %1456 = vrot.lane.b32.xlu0 %v1454, 28
        %v1457 = vpop.permute.xlu0 %1456
        %vm1459 = vcmask 261344
        %1460 = vst.msk [vmem:[#allocation3] sm:$0xff] %vm1459, %v1457
        %v1461 = vld [vmem:[#allocation2] sm:$0xff]
        %v1462 = vld [vmem:[#allocation3] sm:$0xff]
        %v1463 = vpack.c.bf16 %v1462, %v1462
        %v1480 = vunpack.c.l.b16 %v309
        %v1481 = vunpack.c.l.b16 %v310
        %v1482 = vunpack.c.l.b16 %v311
        %v1483 = vunpack.c.l.b16 %v312
        %v1484 = vunpack.c.l.b16 %v313
        %v1485 = vunpack.c.l.b16 %v314
        %v1486 = vunpack.c.l.b16 %v315
        %v1487 = vunpack.c.l.b16 %v316
        %v1488 = vunpack.c.l.b16 %v317
        %v1489 = vunpack.c.l.b16 %v318
        %v1490 = vunpack.c.l.b16 %v319
        %v1491 = vunpack.c.l.b16 %v320
        %v1492 = vunpack.c.l.b16 %v321
        %v1493 = vunpack.c.l.b16 %v322
        %v1494 = vunpack.c.l.b16 %v323
        %v1495 = vunpack.c.l.b16 %v324
        %v1496 = vpack.c.b16 %v1481, %v1480
        %v1497 = vpack.c.b16 %v1483, %v1482
        %v1498 = vpack.c.b16 %v1485, %v1484
        %v1499 = vpack.c.b16 %v1487, %v1486
        %v1500 = vpack.c.b16 %v1489, %v1488
        %v1501 = vpack.c.b16 %v1491, %v1490
        %v1502 = vpack.c.b16 %v1493, %v1492
        %v1503 = vpack.c.b16 %v1495, %v1494
        %1512 = vmatprep.subr.bf16.mxu0 0
        %1513 = vmatpush1.bf16.msra.mxu0 %v1496
        %1514 = vmatprep.subr.bf16.mxu0 0
        %1515 = vmatpush1.bf16.msra.mxu0 %v1497
        %1516 = vmatprep.subr.bf16.mxu0 0
        %1517 = vmatpush1.bf16.msra.mxu0 %v1498
        %1518 = vmatprep.subr.bf16.mxu0 0
        %1519 = vmatpush1.bf16.msra.mxu0 %v1499
        %1520 = vmatprep.subr.bf16.mxu0 0
        %1521 = vmatpush1.bf16.msra.mxu0 %v1500
        %1522 = vmatprep.subr.bf16.mxu0 0
        %1523 = vmatpush1.bf16.msra.mxu0 %v1501
        %1524 = vmatprep.subr.bf16.mxu0 0
        %1525 = vmatpush1.bf16.msra.mxu0 %v1502
        %1526 = vmatprep.subr.bf16.mxu0 0
        %1527 = vmatpush1.bf16.msra.mxu0 %v1503
        %1528 = vmatprep.subr.bf16.mxu0 0
        %1529 = vmatpush1.bf16.msra.mxu0 0
        %1530 = vmatprep.subr.bf16.mxu0 0
        %1531 = vmatpush1.bf16.msra.mxu0 0
        %1532 = vmatprep.subr.bf16.mxu0 0
        %1533 = vmatpush1.bf16.msra.mxu0 0
        %1534 = vmatprep.subr.bf16.mxu0 0
        %1535 = vmatpush1.bf16.msra.mxu0 0
        %1536 = vmatprep.subr.bf16.mxu0 0
        %1537 = vmatpush1.bf16.msra.mxu0 0
        %1538 = vmatprep.subr.bf16.mxu0 0
        %1539 = vmatpush1.bf16.msra.mxu0 0
        %1540 = vmatprep.subr.bf16.mxu0 0
        %1541 = vmatpush1.bf16.msra.mxu0 0
        %1542 = vmatprep.subr.bf16.mxu0 0
        %1543 = vmatpush1.bf16.msra.mxu0 0
        %1544 = vmatprep.mubr.bf16.mxu0 0
        %1545 = vmatmul.mubr.bf16.gmra.mrb[0].mxu0 %v1463
        %v1546 = vpop.f32.mrb[0].mxu0
        %v1547 = vadd.f32 0.0, %v1546
        %v1548 = vpop.f32.mrb[0].mxu0
        %v1549 = vpop.f32.mrb[0].mxu0
        %v1550 = vpop.f32.mrb[0].mxu0
        %1551 = vdwg.mxu0
        %v1552 = vadd.f32 %v1461, %v1547
        %1553 = vst [vmem:[#allocation2] sm:$0xff] %v1552
        // Predicated region
        $region53: #{tpu_custom_call.1} parent=35 // pred_check
          %p1554 = pneg %p271
        $region54: #{tpu_custom_call.1} parent=35 // pred_check_branch
          %1556 = sbr.rel (%p1554) target = $region56
        $region55: #{tpu_custom_call.1} parent=35 // pred_region
          %v1557 = vld [vmem:[#allocation2] sm:$0xff]
          %v1558 = vld [vmem:[%s3] sm:$0x1]
          %v1560 = vlaneseq
          %v1561 = vshrl.u32 %v1560, 7
          %v1562 = vsub.s32 0, %v1561
          %v1563 = vrot.slane %v1558, %v1562
          %v1565 = vadd.f32 %v1557, %v1563
          %1566 = vst [vmem:[%s269] sm:$0xff] %v1565
        $region56: #{tpu_custom_call.1} parent=35 // pred_fallthru
          _
        %s1567 = sand.u32 %s141, 1
        %s1568 = scalar_lea.sflag [#allocation6], %s1567
        %s1569 = sand.u32 %s141, 1
        %s1570 = smul.addr %s1569, 8
        %s1571 = scalar_lea.vmem [#allocation10], %s1570
        // Predicated region
        $region57: #{tpu_custom_call.1} parent=35 // pred_check
          %p1572 = pneg %p151
        $region58: #{tpu_custom_call.1} parent=35 // pred_check_branch
          %1574 = sbr.rel (%p1572) target = $region60
        $region59: #{tpu_custom_call.1} parent=35 // pred_region
          %s1576 = ssub.s32 128, 128
          %1577 = vsyncadd %s1568, %s1576
          %s1578 = smul.addr %s26, 128
          %s1579 = scalar_lea.hbm %s4, %s1578
          %s1581 = sshll.u32 %s1571, 4
          %s1582 = int_to_ptr.vmem [resolvable:$true] %s1581
          %1584 = dma.vmem_to_hbm [thread:$0]  %s1582, 128, %s1579, %s1568
        $region60: #{tpu_custom_call.1} parent=35 // pred_fallthru
          _
      $region36: #{tpu_custom_call.1} parent=5 // pred_fallthru
        _
      %p1585 = scmp.le.s32.totalorder 2, %s17
      // Predicated region
      $region61: #{tpu_custom_call.1} parent=5 // pred_check
        %p1586 = pneg %p1585
      $region62: #{tpu_custom_call.1} parent=5 // pred_check_branch
        %1588 = sbr.rel (%p1586) target = $region64
      $region63: #{tpu_custom_call.1} parent=5 // pred_region
        %s1589 = ssub.s32 %s17, 2
        // Predicated region
        $region65: #{tpu_custom_call.1} parent=63 // pred_check
          %p1590 = pneg %p157
        $region66: #{tpu_custom_call.1} parent=63 // pred_check_branch
          %1592 = sbr.rel (%p1590) target = $region68
        $region67: #{tpu_custom_call.1} parent=63 // pred_region
          %s1593 = sand.u32 %s142, 1
          %s1594 = scalar_lea.sflag [#allocation6], %s1593
          %s1595 = sand.u32 %s142, 1
          %s1596 = smul.addr %s1595, 8
          %s1597 = scalar_lea.vmem [#allocation10], %s1596
          %1598 = dma.done %s1594, 128
        $region68: #{tpu_custom_call.1} parent=63 // pred_fallthru
          _
      $region64: #{tpu_custom_call.1} parent=5 // pred_fallthru
        _
    $region6: #{tpu_custom_call.1} parent=1 // loop_footer
      %s21 = sadd.s32 1, %s17
    $region7: #{tpu_custom_call.1} parent=1 // loop_footer_branch
      %16 = sbr.rel target = $region3
    $region8: #{tpu_custom_call.1} parent=1 // loop_exit
      _
    %1599 = vsyncpa [#allocation5], 1
    %s1600 = scalar_lea.sflag [#allocation5], 1
    %1601 = vsyncpa %s1600, 1
    %1602 = vsyncpa [#allocation8], 1
    %1603 = vsyncpa [#allocation6], 1
    %s1604 = scalar_lea.sflag [#allocation6], 1
    %1605 = vsyncpa %s1604, 1

</llo_original>
